<compile_context>
chip_gen: v7x
topology: tpu7x:2x2x1
jax: 0.10.0
libtpu: 0.0.40
codegen_flags: <defaults>
</compile_context>

<pallas_src>
import jax
import jax.numpy as jnp
from jax.experimental import pallas as pl
from jax.experimental.pallas import tpu as pltpu


def _round_up(x, m):
    return ((x + m - 1) // m) * m


def _make_kernel(Bt, C, HW, W, K, P, L, OFF, x_dtype):
    KK = K * K
    bf16_scale = x_dtype == jnp.bfloat16

    def kernel(w_ref, mask_ref, x_ref, o_ref, avg_pad, max_pad):
        # Re-zero only the borders each grid step (interior is fully rewritten below).
        # OFF and (when HW % 128 == 0) OFF+HW are lane-aligned -> full vst.
        zero_head = jnp.zeros((Bt, OFF), jnp.float32)
        zero_tail = jnp.zeros((Bt, L - OFF - HW), jnp.float32)
        avg_pad[:, :OFF] = zero_head
        avg_pad[:, OFF + HW:] = zero_tail
        max_pad[:, :OFF] = zero_head
        max_pad[:, OFF + HW:] = zero_tail

        # ---- channel mean / max, sublane-batched over the Bt images --------------
        # TODO(synk): for very large C switch this static unroll to a fori_loop.
        s = x_ref[:, 0, :].astype(jnp.float32)          # (Bt, HW)
        m = s
        for c in range(1, C):
            xc = x_ref[:, c, :].astype(jnp.float32)
            s = s + xc
            m = jnp.maximum(m, xc)
        avg_pad[:, OFF:OFF + HW] = s * (1.0 / C)
        max_pad[:, OFF:OFF + HW] = m

        # ---- 98-tap KxK conv on the flattened maps (weights pre-summed) ----------
        # Tap (c, dy, dx): flat lane shift (dy-P)*W + (dx-P) of the zero-padded
        # scratch; the per-dx column mask removes the row wrap-around once per dx.
        acc = jnp.zeros((Bt, HW), jnp.float32)
        for dx in range(K):
            part = jnp.zeros((Bt, HW), jnp.float32)
            for dy in range(K):
                start = OFF + (dy - P) * W + (dx - P)
                part = part + w_ref[dy * K + dx] * avg_pad[:, start:start + HW]
                part = part + w_ref[KK + dy * K + dx] * max_pad[:, start:start + HW]
            acc = acc + mask_ref[dx][None, :] * part

        att = jax.nn.sigmoid(acc)                        # (Bt, HW), f32

        # ---- scale & store (x re-read from VMEM; not kept live across the conv) --
        if bf16_scale:
            att_c = att.astype(x_dtype)
            for c in range(C):
                o_ref[:, c, :] = x_ref[:, c, :] * att_c
        else:
            for c in range(C):
                o_ref[:, c, :] = (x_ref[:, c, :].astype(jnp.float32) * att
                                  ).astype(o_ref.dtype)

    return kernel


def _pick_batch_tile(n, bytes_per_image, target_bytes=8 << 20, min_steps=4):
    """Images per grid step.

    Goals: (a) ~target_bytes per block so the ~0.35us/step overhead is amortised and
    the DMA engine stays saturated, (b) a multiple of 8 images so the sublane-batched
    conv scratch fills vregs, (c) >= min_steps grid steps when there is enough work so
    the "parallel" axis shards across both v7x TensorCores, (d) never larger than N.
    Bt need not divide N (the grid uses cdiv and Pallas pads the last block).
    """
    bt = max(1, int(target_bytes) // max(1, bytes_per_image))      # (a)
    if n >= min_steps * 8:                                         # (c)
        bt = min(bt, pl.cdiv(n, min_steps))
    if bt >= 8:                                                    # (b)
        bt -= bt % 8
    return max(1, min(bt, n))                                      # (d)


def enhanced_spatial_attention(x, w1, w2, w3, kernel_size=7):
    """x: (N, C, H, W); w1/w2/w3: (1, 2, K, K) conv weights (no bias)."""
    assert kernel_size in (3, 7)
    K = kernel_size
    P = 3 if K == 7 else 1
    N, C, H, W = x.shape
    HW = H * W
    pad_len = P * W + P                       # max |flat shift| of any tap
    OFF = _round_up(pad_len, 128)             # lane-aligned interior start
    L = _round_up(OFF + HW + pad_len, 128)    # padded flat scratch length

    # conv1(z) + conv2(z) + conv3(z) == conv(z, w1 + w2 + w3) by linearity.
    w_flat = (w1 + w2 + w3).astype(jnp.float32).reshape(-1)              # (2*K*K,)

    # Per-dx column masks removing the row wrap-around of flat shifts.
    col = jnp.arange(HW, dtype=jnp.int32) % W                            # (HW,)
    off = jnp.arange(K, dtype=jnp.int32)[:, None] - P                    # (K, 1)
    masks = ((col[None, :] + off >= 0) & (col[None, :] + off < W)
             ).astype(jnp.float32)                                       # (K, HW)

    # Lane-dense layout: last dim H*W.
    x_flat = x.reshape(N, C, HW)

    itemsize = jnp.dtype(x.dtype).itemsize
    bytes_per_image = C * HW * itemsize
    Bt = _pick_batch_tile(N, bytes_per_image)
    grid = pl.cdiv(N, Bt)

    kernel = _make_kernel(Bt, C, HW, W, K, P, L, OFF, x.dtype)

    block_bytes = Bt * bytes_per_image
    scratch_bytes = 2 * Bt * L * 4
    # in + out double-buffered + scratches + headroom; stays well under v7x's 64 MiB.
    vmem_limit = int(min(100 * 1024 * 1024,
                         max(32 * 1024 * 1024,
                             4 * block_bytes + scratch_bytes + (4 << 20))))

    flops = N * HW * (3 * C + 4 * K * K + C)
    bytes_accessed = 2 * N * C * HW * itemsize + w_flat.size * 4 + masks.size * 4

    out = pl.pallas_call(
        kernel,
        out_shape=jax.ShapeDtypeStruct((N, C, HW), x.dtype),
        grid_spec=pltpu.PrefetchScalarGridSpec(
            num_scalar_prefetch=0,
            grid=(grid,),
            in_specs=[
                pl.BlockSpec(memory_space=pltpu.MemorySpace.SMEM),  # summed weights
                pl.BlockSpec((K, HW), lambda i: (0, 0)),            # column masks
                pl.BlockSpec((Bt, C, HW), lambda i: (i, 0, 0)),     # x (lane-dense)
            ],
            out_specs=pl.BlockSpec((Bt, C, HW), lambda i: (i, 0, 0)),
            scratch_shapes=[pltpu.VMEM((Bt, L), jnp.float32),       # padded avg map
                            pltpu.VMEM((Bt, L), jnp.float32)],      # padded max map
        ),
        compiler_params=pltpu.CompilerParams(
            dimension_semantics=("parallel",),
            vmem_limit_bytes=vmem_limit),
        cost_estimate=pl.CostEstimate(
            flops=flops, transcendentals=N * HW, bytes_accessed=bytes_accessed),
    )(w_flat, masks, x_flat)

    return out.reshape(N, C, H, W)


def reference(x, w1, w2, w3, kernel_size=7):
    P = 3 if kernel_size == 7 else 1
    avg = jnp.mean(x, axis=1, keepdims=True)
    mx = jnp.max(x, axis=1, keepdims=True)
    comb = jnp.concatenate([avg, mx], axis=1)

    def conv(w):
        return jax.lax.conv_general_dilated(
            comb, w, window_strides=(1, 1), padding=[(P, P), (P, P)],
            dimension_numbers=("NCHW", "OIHW", "NCHW"))

    cc = conv(w1) + conv(w2) + conv(w3)
    return x * jax.nn.sigmoid(cc)


if __name__ == "__main__":
    key = jax.random.PRNGKey(0)
    kx, k1, k2, k3 = jax.random.split(key, 4)

    N, C, H, W = 2, 4, 16, 16
    K = 7
    x = jax.random.normal(kx, (N, C, H, W), dtype=jnp.float32)
    # Conv weights, shape (out=1, in=2, K, K), no bias.
    w1 = 0.05 * jax.random.normal(k1, (1, 2, K, K), dtype=jnp.float32)
    w2 = 0.05 * jax.random.normal(k2, (1, 2, K, K), dtype=jnp.float32)
    w3 = 0.05 * jax.random.normal(k3, (1, 2, K, K), dtype=jnp.float32)

    out = enhanced_spatial_attention(x, w1, w2, w3, kernel_size=K)
    out = jax.block_until_ready(out)

    ref = reference(x, w1, w2, w3, kernel_size=K)
    assert out.shape == ref.shape and out.dtype == ref.dtype
    assert jnp.allclose(out, ref, atol=1e-4, rtol=1e-4), "mismatch vs reference"

    print("KERNEL_OK")
</pallas_src>

<mosaic_0001>
module attributes {stable_mosaic.version = 11 : i64} {
  func.func @kernel(%arg0: i32, %arg1: memref<98xf32, #tpu.memory_space<smem>>, %arg2: memref<7x256xf32, #tpu.memory_space<vmem>>, %arg3: memref<2x4x256xf32, #tpu.memory_space<vmem>>, %arg4: memref<2x4x256xf32, #tpu.memory_space<vmem>>, %arg5: memref<2x512xf32, #tpu.memory_space<vmem>>, %arg6: memref<2x512xf32, #tpu.memory_space<vmem>>) attributes {dimension_semantics = [#tpu.dimension_semantics<parallel>], iteration_bounds = array<i64: 1>, scalar_prefetch = 0 : i64, scratch_operands = 2 : i64, tpu.core_type = #tpu.core_type<tc>, window_params = [{transform_indices = @transform_0, window_bounds = array<i64: 98>}, {pipeline_mode = #tpu.pipeline_mode<synchronous>, transform_indices = @transform_1, window_bounds = array<i64: 7, 256>}, {transform_indices = @transform_2, window_bounds = array<i64: 2, 4, 256>}, {transform_indices = @transform_3, window_bounds = array<i64: 2, 4, 256>}]} {
    %cst = arith.constant 0.000000e+00 : f32
    %0 = vector.broadcast %cst : f32 to vector<2x128xf32>
    %cst_0 = arith.constant 0.000000e+00 : f32
    %1 = vector.broadcast %cst_0 : f32 to vector<2x128xf32>
    %c0 = arith.constant 0 : index
    %c0_1 = arith.constant 0 : index
    %2 = vector.load %arg5[%c0, %c0_1] : memref<2x512xf32, #tpu.memory_space<vmem>>, vector<2x128xf32>
    tpu.vector_store %arg5[%c0, %c0_1], %0 {strides = array<i32>} : memref<2x512xf32, #tpu.memory_space<vmem>>, vector<2x128xf32>,
    %c0_2 = arith.constant 0 : index
    %c384 = arith.constant 384 : index
    %3 = vector.load %arg5[%c0_2, %c384] : memref<2x512xf32, #tpu.memory_space<vmem>>, vector<2x128xf32>
    tpu.vector_store %arg5[%c0_2, %c384], %1 {strides = array<i32>} : memref<2x512xf32, #tpu.memory_space<vmem>>, vector<2x128xf32>,
    %c0_3 = arith.constant 0 : index
    %c0_4 = arith.constant 0 : index
    %4 = vector.load %arg6[%c0_3, %c0_4] : memref<2x512xf32, #tpu.memory_space<vmem>>, vector<2x128xf32>
    tpu.vector_store %arg6[%c0_3, %c0_4], %0 {strides = array<i32>} : memref<2x512xf32, #tpu.memory_space<vmem>>, vector<2x128xf32>,
    %c0_5 = arith.constant 0 : index
    %c384_6 = arith.constant 384 : index
    %5 = vector.load %arg6[%c0_5, %c384_6] : memref<2x512xf32, #tpu.memory_space<vmem>>, vector<2x128xf32>
    tpu.vector_store %arg6[%c0_5, %c384_6], %1 {strides = array<i32>} : memref<2x512xf32, #tpu.memory_space<vmem>>, vector<2x128xf32>,
    %c0_7 = arith.constant 0 : index
    %c0_8 = arith.constant 0 : index
    %c0_9 = arith.constant 0 : index
    %6 = vector.load %arg3[%c0_7, %c0_8, %c0_9] : memref<2x4x256xf32, #tpu.memory_space<vmem>>, vector<2x1x256xf32>
    %7 = vector.shape_cast %6 : vector<2x1x256xf32> to vector<2x256xf32>
    %c0_10 = arith.constant 0 : index
    %c1 = arith.constant 1 : index
    %c0_11 = arith.constant 0 : index
    %8 = vector.load %arg3[%c0_10, %c1, %c0_11] : memref<2x4x256xf32, #tpu.memory_space<vmem>>, vector<2x1x256xf32>
    %9 = vector.shape_cast %8 : vector<2x1x256xf32> to vector<2x256xf32>
    %10 = arith.addf %7, %9 : vector<2x256xf32>
    %11 = arith.maximumf %7, %9 : vector<2x256xf32>
    %c0_12 = arith.constant 0 : index
    %c2 = arith.constant 2 : index
    %c0_13 = arith.constant 0 : index
    %12 = vector.load %arg3[%c0_12, %c2, %c0_13] : memref<2x4x256xf32, #tpu.memory_space<vmem>>, vector<2x1x256xf32>
    %13 = vector.shape_cast %12 : vector<2x1x256xf32> to vector<2x256xf32>
    %14 = arith.addf %10, %13 : vector<2x256xf32>
    %15 = arith.maximumf %11, %13 : vector<2x256xf32>
    %c0_14 = arith.constant 0 : index
    %c3 = arith.constant 3 : index
    %c0_15 = arith.constant 0 : index
    %16 = vector.load %arg3[%c0_14, %c3, %c0_15] : memref<2x4x256xf32, #tpu.memory_space<vmem>>, vector<2x1x256xf32>
    %17 = vector.shape_cast %16 : vector<2x1x256xf32> to vector<2x256xf32>
    %18 = arith.addf %14, %17 : vector<2x256xf32>
    %19 = arith.maximumf %15, %17 : vector<2x256xf32>
    %cst_16 = arith.constant 2.500000e-01 : f32
    %20 = vector.broadcast %cst_16 : f32 to vector<2x256xf32>
    %21 = arith.mulf %18, %20 : vector<2x256xf32>
    %c0_17 = arith.constant 0 : index
    %c128 = arith.constant 128 : index
    %22 = vector.load %arg5[%c0_17, %c128] : memref<2x512xf32, #tpu.memory_space<vmem>>, vector<2x256xf32>
    tpu.vector_store %arg5[%c0_17, %c128], %21 {strides = array<i32>} : memref<2x512xf32, #tpu.memory_space<vmem>>, vector<2x256xf32>,
    %c0_18 = arith.constant 0 : index
    %c128_19 = arith.constant 128 : index
    %23 = vector.load %arg6[%c0_18, %c128_19] : memref<2x512xf32, #tpu.memory_space<vmem>>, vector<2x256xf32>
    tpu.vector_store %arg6[%c0_18, %c128_19], %19 {strides = array<i32>} : memref<2x512xf32, #tpu.memory_space<vmem>>, vector<2x256xf32>,
    %cst_20 = arith.constant 0.000000e+00 : f32
    %24 = vector.broadcast %cst_20 : f32 to vector<2x256xf32>
    %cst_21 = arith.constant 0.000000e+00 : f32
    %25 = vector.broadcast %cst_21 : f32 to vector<2x256xf32>
    %c0_22 = arith.constant 0 : index
    %26 = memref.load %arg1[%c0_22] : memref<98xf32, #tpu.memory_space<smem>>
    %c0_23 = arith.constant 0 : index
    %c77 = arith.constant 77 : index
    %27 = vector.load %arg5[%c0_23, %c77] : memref<2x512xf32, #tpu.memory_space<vmem>>, vector<2x256xf32>
    %28 = vector.broadcast %26 : f32 to vector<2x256xf32>
    %29 = arith.mulf %28, %27 : vector<2x256xf32>
    %30 = arith.addf %25, %29 : vector<2x256xf32>
    %c49 = arith.constant 49 : index
    %31 = memref.load %arg1[%c49] : memref<98xf32, #tpu.memory_space<smem>>
    %c0_24 = arith.constant 0 : index
    %c77_25 = arith.constant 77 : index
    %32 = vector.load %arg6[%c0_24, %c77_25] : memref<2x512xf32, #tpu.memory_space<vmem>>, vector<2x256xf32>
    %33 = vector.broadcast %31 : f32 to vector<2x256xf32>
    %34 = arith.mulf %33, %32 : vector<2x256xf32>
    %35 = arith.addf %30, %34 : vector<2x256xf32>
    %c7 = arith.constant 7 : index
    %36 = memref.load %arg1[%c7] : memref<98xf32, #tpu.memory_space<smem>>
    %c0_26 = arith.constant 0 : index
    %c93 = arith.constant 93 : index
    %37 = vector.load %arg5[%c0_26, %c93] : memref<2x512xf32, #tpu.memory_space<vmem>>, vector<2x256xf32>
    %38 = vector.broadcast %36 : f32 to vector<2x256xf32>
    %39 = arith.mulf %38, %37 : vector<2x256xf32>
    %40 = arith.addf %35, %39 : vector<2x256xf32>
    %c56 = arith.constant 56 : index
    %41 = memref.load %arg1[%c56] : memref<98xf32, #tpu.memory_space<smem>>
    %c0_27 = arith.constant 0 : index
    %c93_28 = arith.constant 93 : index
    %42 = vector.load %arg6[%c0_27, %c93_28] : memref<2x512xf32, #tpu.memory_space<vmem>>, vector<2x256xf32>
    %43 = vector.broadcast %41 : f32 to vector<2x256xf32>
    %44 = arith.mulf %43, %42 : vector<2x256xf32>
    %45 = arith.addf %40, %44 : vector<2x256xf32>
    %c14 = arith.constant 14 : index
    %46 = memref.load %arg1[%c14] : memref<98xf32, #tpu.memory_space<smem>>
    %c0_29 = arith.constant 0 : index
    %c109 = arith.constant 109 : index
    %47 = vector.load %arg5[%c0_29, %c109] : memref<2x512xf32, #tpu.memory_space<vmem>>, vector<2x256xf32>
    %48 = vector.broadcast %46 : f32 to vector<2x256xf32>
    %49 = arith.mulf %48, %47 : vector<2x256xf32>
    %50 = arith.addf %45, %49 : vector<2x256xf32>
    %c63 = arith.constant 63 : index
    %51 = memref.load %arg1[%c63] : memref<98xf32, #tpu.memory_space<smem>>
    %c0_30 = arith.constant 0 : index
    %c109_31 = arith.constant 109 : index
    %52 = vector.load %arg6[%c0_30, %c109_31] : memref<2x512xf32, #tpu.memory_space<vmem>>, vector<2x256xf32>
    %53 = vector.broadcast %51 : f32 to vector<2x256xf32>
    %54 = arith.mulf %53, %52 : vector<2x256xf32>
    %55 = arith.addf %50, %54 : vector<2x256xf32>
    %c21 = arith.constant 21 : index
    %56 = memref.load %arg1[%c21] : memref<98xf32, #tpu.memory_space<smem>>
    %c0_32 = arith.constant 0 : index
    %c125 = arith.constant 125 : index
    %57 = vector.load %arg5[%c0_32, %c125] : memref<2x512xf32, #tpu.memory_space<vmem>>, vector<2x256xf32>
    %58 = vector.broadcast %56 : f32 to vector<2x256xf32>
    %59 = arith.mulf %58, %57 : vector<2x256xf32>
    %60 = arith.addf %55, %59 : vector<2x256xf32>
    %c70 = arith.constant 70 : index
    %61 = memref.load %arg1[%c70] : memref<98xf32, #tpu.memory_space<smem>>
    %c0_33 = arith.constant 0 : index
    %c125_34 = arith.constant 125 : index
    %62 = vector.load %arg6[%c0_33, %c125_34] : memref<2x512xf32, #tpu.memory_space<vmem>>, vector<2x256xf32>
    %63 = vector.broadcast %61 : f32 to vector<2x256xf32>
    %64 = arith.mulf %63, %62 : vector<2x256xf32>
    %65 = arith.addf %60, %64 : vector<2x256xf32>
    %c28 = arith.constant 28 : index
    %66 = memref.load %arg1[%c28] : memref<98xf32, #tpu.memory_space<smem>>
    %c0_35 = arith.constant 0 : index
    %c141 = arith.constant 141 : index
    %67 = vector.load %arg5[%c0_35, %c141] : memref<2x512xf32, #tpu.memory_space<vmem>>, vector<2x256xf32>
    %68 = vector.broadcast %66 : f32 to vector<2x256xf32>
    %69 = arith.mulf %68, %67 : vector<2x256xf32>
    %70 = arith.addf %65, %69 : vector<2x256xf32>
    %c77_36 = arith.constant 77 : index
    %71 = memref.load %arg1[%c77_36] : memref<98xf32, #tpu.memory_space<smem>>
    %c0_37 = arith.constant 0 : index
    %c141_38 = arith.constant 141 : index
    %72 = vector.load %arg6[%c0_37, %c141_38] : memref<2x512xf32, #tpu.memory_space<vmem>>, vector<2x256xf32>
    %73 = vector.broadcast %71 : f32 to vector<2x256xf32>
    %74 = arith.mulf %73, %72 : vector<2x256xf32>
    %75 = arith.addf %70, %74 : vector<2x256xf32>
    %c35 = arith.constant 35 : index
    %76 = memref.load %arg1[%c35] : memref<98xf32, #tpu.memory_space<smem>>
    %c0_39 = arith.constant 0 : index
    %c157 = arith.constant 157 : index
    %77 = vector.load %arg5[%c0_39, %c157] : memref<2x512xf32, #tpu.memory_space<vmem>>, vector<2x256xf32>
    %78 = vector.broadcast %76 : f32 to vector<2x256xf32>
    %79 = arith.mulf %78, %77 : vector<2x256xf32>
    %80 = arith.addf %75, %79 : vector<2x256xf32>
    %c84 = arith.constant 84 : index
    %81 = memref.load %arg1[%c84] : memref<98xf32, #tpu.memory_space<smem>>
    %c0_40 = arith.constant 0 : index
    %c157_41 = arith.constant 157 : index
    %82 = vector.load %arg6[%c0_40, %c157_41] : memref<2x512xf32, #tpu.memory_space<vmem>>, vector<2x256xf32>
    %83 = vector.broadcast %81 : f32 to vector<2x256xf32>
    %84 = arith.mulf %83, %82 : vector<2x256xf32>
    %85 = arith.addf %80, %84 : vector<2x256xf32>
    %c42 = arith.constant 42 : index
    %86 = memref.load %arg1[%c42] : memref<98xf32, #tpu.memory_space<smem>>
    %c0_42 = arith.constant 0 : index
    %c173 = arith.constant 173 : index
    %87 = vector.load %arg5[%c0_42, %c173] : memref<2x512xf32, #tpu.memory_space<vmem>>, vector<2x256xf32>
    %88 = vector.broadcast %86 : f32 to vector<2x256xf32>
    %89 = arith.mulf %88, %87 : vector<2x256xf32>
    %90 = arith.addf %85, %89 : vector<2x256xf32>
    %c91 = arith.constant 91 : index
    %91 = memref.load %arg1[%c91] : memref<98xf32, #tpu.memory_space<smem>>
    %c0_43 = arith.constant 0 : index
    %c173_44 = arith.constant 173 : index
    %92 = vector.load %arg6[%c0_43, %c173_44] : memref<2x512xf32, #tpu.memory_space<vmem>>, vector<2x256xf32>
    %93 = vector.broadcast %91 : f32 to vector<2x256xf32>
    %94 = arith.mulf %93, %92 : vector<2x256xf32>
    %95 = arith.addf %90, %94 : vector<2x256xf32>
    %c0_45 = arith.constant 0 : index
    %c0_46 = arith.constant 0 : index
    %96 = vector.load %arg2[%c0_45, %c0_46] : memref<7x256xf32, #tpu.memory_space<vmem>>, vector<1x256xf32>
    %97 = vector.shape_cast %96 : vector<1x256xf32> to vector<256xf32>
    %98 = vector.shape_cast %97 : vector<256xf32> to vector<1x256xf32>
    %99 = vector.broadcast %98 : vector<1x256xf32> to vector<2x256xf32>
    %100 = arith.mulf %99, %95 : vector<2x256xf32>
    %101 = arith.addf %24, %100 : vector<2x256xf32>
    %cst_47 = arith.constant 0.000000e+00 : f32
    %102 = vector.broadcast %cst_47 : f32 to vector<2x256xf32>
    %c1_48 = arith.constant 1 : index
    %103 = memref.load %arg1[%c1_48] : memref<98xf32, #tpu.memory_space<smem>>
    %c0_49 = arith.constant 0 : index
    %c78 = arith.constant 78 : index
    %104 = vector.load %arg5[%c0_49, %c78] : memref<2x512xf32, #tpu.memory_space<vmem>>, vector<2x256xf32>
    %105 = vector.broadcast %103 : f32 to vector<2x256xf32>
    %106 = arith.mulf %105, %104 : vector<2x256xf32>
    %107 = arith.addf %102, %106 : vector<2x256xf32>
    %c50 = arith.constant 50 : index
    %108 = memref.load %arg1[%c50] : memref<98xf32, #tpu.memory_space<smem>>
    %c0_50 = arith.constant 0 : index
    %c78_51 = arith.constant 78 : index
    %109 = vector.load %arg6[%c0_50, %c78_51] : memref<2x512xf32, #tpu.memory_space<vmem>>, vector<2x256xf32>
    %110 = vector.broadcast %108 : f32 to vector<2x256xf32>
    %111 = arith.mulf %110, %109 : vector<2x256xf32>
    %112 = arith.addf %107, %111 : vector<2x256xf32>
    %c8 = arith.constant 8 : index
    %113 = memref.load %arg1[%c8] : memref<98xf32, #tpu.memory_space<smem>>
    %c0_52 = arith.constant 0 : index
    %c94 = arith.constant 94 : index
    %114 = vector.load %arg5[%c0_52, %c94] : memref<2x512xf32, #tpu.memory_space<vmem>>, vector<2x256xf32>
    %115 = vector.broadcast %113 : f32 to vector<2x256xf32>
    %116 = arith.mulf %115, %114 : vector<2x256xf32>
    %117 = arith.addf %112, %116 : vector<2x256xf32>
    %c57 = arith.constant 57 : index
    %118 = memref.load %arg1[%c57] : memref<98xf32, #tpu.memory_space<smem>>
    %c0_53 = arith.constant 0 : index
    %c94_54 = arith.constant 94 : index
    %119 = vector.load %arg6[%c0_53, %c94_54] : memref<2x512xf32, #tpu.memory_space<vmem>>, vector<2x256xf32>
    %120 = vector.broadcast %118 : f32 to vector<2x256xf32>
    %121 = arith.mulf %120, %119 : vector<2x256xf32>
    %122 = arith.addf %117, %121 : vector<2x256xf32>
    %c15 = arith.constant 15 : index
    %123 = memref.load %arg1[%c15] : memref<98xf32, #tpu.memory_space<smem>>
    %c0_55 = arith.constant 0 : index
    %c110 = arith.constant 110 : index
    %124 = vector.load %arg5[%c0_55, %c110] : memref<2x512xf32, #tpu.memory_space<vmem>>, vector<2x256xf32>
    %125 = vector.broadcast %123 : f32 to vector<2x256xf32>
    %126 = arith.mulf %125, %124 : vector<2x256xf32>
    %127 = arith.addf %122, %126 : vector<2x256xf32>
    %c64 = arith.constant 64 : index
    %128 = memref.load %arg1[%c64] : memref<98xf32, #tpu.memory_space<smem>>
    %c0_56 = arith.constant 0 : index
    %c110_57 = arith.constant 110 : index
    %129 = vector.load %arg6[%c0_56, %c110_57] : memref<2x512xf32, #tpu.memory_space<vmem>>, vector<2x256xf32>
    %130 = vector.broadcast %128 : f32 to vector<2x256xf32>
    %131 = arith.mulf %130, %129 : vector<2x256xf32>
    %132 = arith.addf %127, %131 : vector<2x256xf32>
    %c22 = arith.constant 22 : index
    %133 = memref.load %arg1[%c22] : memref<98xf32, #tpu.memory_space<smem>>
    %c0_58 = arith.constant 0 : index
    %c126 = arith.constant 126 : index
    %134 = vector.load %arg5[%c0_58, %c126] : memref<2x512xf32, #tpu.memory_space<vmem>>, vector<2x256xf32>
    %135 = vector.broadcast %133 : f32 to vector<2x256xf32>
    %136 = arith.mulf %135, %134 : vector<2x256xf32>
    %137 = arith.addf %132, %136 : vector<2x256xf32>
    %c71 = arith.constant 71 : index
    %138 = memref.load %arg1[%c71] : memref<98xf32, #tpu.memory_space<smem>>
    %c0_59 = arith.constant 0 : index
    %c126_60 = arith.constant 126 : index
    %139 = vector.load %arg6[%c0_59, %c126_60] : memref<2x512xf32, #tpu.memory_space<vmem>>, vector<2x256xf32>
    %140 = vector.broadcast %138 : f32 to vector<2x256xf32>
    %141 = arith.mulf %140, %139 : vector<2x256xf32>
    %142 = arith.addf %137, %141 : vector<2x256xf32>
    %c29 = arith.constant 29 : index
    %143 = memref.load %arg1[%c29] : memref<98xf32, #tpu.memory_space<smem>>
    %c0_61 = arith.constant 0 : index
    %c142 = arith.constant 142 : index
    %144 = vector.load %arg5[%c0_61, %c142] : memref<2x512xf32, #tpu.memory_space<vmem>>, vector<2x256xf32>
    %145 = vector.broadcast %143 : f32 to vector<2x256xf32>
    %146 = arith.mulf %145, %144 : vector<2x256xf32>
    %147 = arith.addf %142, %146 : vector<2x256xf32>
    %c78_62 = arith.constant 78 : index
    %148 = memref.load %arg1[%c78_62] : memref<98xf32, #tpu.memory_space<smem>>
    %c0_63 = arith.constant 0 : index
    %c142_64 = arith.constant 142 : index
    %149 = vector.load %arg6[%c0_63, %c142_64] : memref<2x512xf32, #tpu.memory_space<vmem>>, vector<2x256xf32>
    %150 = vector.broadcast %148 : f32 to vector<2x256xf32>
    %151 = arith.mulf %150, %149 : vector<2x256xf32>
    %152 = arith.addf %147, %151 : vector<2x256xf32>
    %c36 = arith.constant 36 : index
    %153 = memref.load %arg1[%c36] : memref<98xf32, #tpu.memory_space<smem>>
    %c0_65 = arith.constant 0 : index
    %c158 = arith.constant 158 : index
    %154 = vector.load %arg5[%c0_65, %c158] : memref<2x512xf32, #tpu.memory_space<vmem>>, vector<2x256xf32>
    %155 = vector.broadcast %153 : f32 to vector<2x256xf32>
    %156 = arith.mulf %155, %154 : vector<2x256xf32>
    %157 = arith.addf %152, %156 : vector<2x256xf32>
    %c85 = arith.constant 85 : index
    %158 = memref.load %arg1[%c85] : memref<98xf32, #tpu.memory_space<smem>>
    %c0_66 = arith.constant 0 : index
    %c158_67 = arith.constant 158 : index
    %159 = vector.load %arg6[%c0_66, %c158_67] : memref<2x512xf32, #tpu.memory_space<vmem>>, vector<2x256xf32>
    %160 = vector.broadcast %158 : f32 to vector<2x256xf32>
    %161 = arith.mulf %160, %159 : vector<2x256xf32>
    %162 = arith.addf %157, %161 : vector<2x256xf32>
    %c43 = arith.constant 43 : index
    %163 = memref.load %arg1[%c43] : memref<98xf32, #tpu.memory_space<smem>>
    %c0_68 = arith.constant 0 : index
    %c174 = arith.constant 174 : index
    %164 = vector.load %arg5[%c0_68, %c174] : memref<2x512xf32, #tpu.memory_space<vmem>>, vector<2x256xf32>
    %165 = vector.broadcast %163 : f32 to vector<2x256xf32>
    %166 = arith.mulf %165, %164 : vector<2x256xf32>
    %167 = arith.addf %162, %166 : vector<2x256xf32>
    %c92 = arith.constant 92 : index
    %168 = memref.load %arg1[%c92] : memref<98xf32, #tpu.memory_space<smem>>
    %c0_69 = arith.constant 0 : index
    %c174_70 = arith.constant 174 : index
    %169 = vector.load %arg6[%c0_69, %c174_70] : memref<2x512xf32, #tpu.memory_space<vmem>>, vector<2x256xf32>
    %170 = vector.broadcast %168 : f32 to vector<2x256xf32>
    %171 = arith.mulf %170, %169 : vector<2x256xf32>
    %172 = arith.addf %167, %171 : vector<2x256xf32>
    %c1_71 = arith.constant 1 : index
    %c0_72 = arith.constant 0 : index
    %173 = vector.load %arg2[%c1_71, %c0_72] : memref<7x256xf32, #tpu.memory_space<vmem>>, vector<1x256xf32>
    %174 = vector.shape_cast %173 : vector<1x256xf32> to vector<256xf32>
    %175 = vector.shape_cast %174 : vector<256xf32> to vector<1x256xf32>
    %176 = vector.broadcast %175 : vector<1x256xf32> to vector<2x256xf32>
    %177 = arith.mulf %176, %172 : vector<2x256xf32>
    %178 = arith.addf %101, %177 : vector<2x256xf32>
    %cst_73 = arith.constant 0.000000e+00 : f32
    %179 = vector.broadcast %cst_73 : f32 to vector<2x256xf32>
    %c2_74 = arith.constant 2 : index
    %180 = memref.load %arg1[%c2_74] : memref<98xf32, #tpu.memory_space<smem>>
    %c0_75 = arith.constant 0 : index
    %c79 = arith.constant 79 : index
    %181 = vector.load %arg5[%c0_75, %c79] : memref<2x512xf32, #tpu.memory_space<vmem>>, vector<2x256xf32>
    %182 = vector.broadcast %180 : f32 to vector<2x256xf32>
    %183 = arith.mulf %182, %181 : vector<2x256xf32>
    %184 = arith.addf %179, %183 : vector<2x256xf32>
    %c51 = arith.constant 51 : index
    %185 = memref.load %arg1[%c51] : memref<98xf32, #tpu.memory_space<smem>>
    %c0_76 = arith.constant 0 : index
    %c79_77 = arith.constant 79 : index
    %186 = vector.load %arg6[%c0_76, %c79_77] : memref<2x512xf32, #tpu.memory_space<vmem>>, vector<2x256xf32>
    %187 = vector.broadcast %185 : f32 to vector<2x256xf32>
    %188 = arith.mulf %187, %186 : vector<2x256xf32>
    %189 = arith.addf %184, %188 : vector<2x256xf32>
    %c9 = arith.constant 9 : index
    %190 = memref.load %arg1[%c9] : memref<98xf32, #tpu.memory_space<smem>>
    %c0_78 = arith.constant 0 : index
    %c95 = arith.constant 95 : index
    %191 = vector.load %arg5[%c0_78, %c95] : memref<2x512xf32, #tpu.memory_space<vmem>>, vector<2x256xf32>
    %192 = vector.broadcast %190 : f32 to vector<2x256xf32>
    %193 = arith.mulf %192, %191 : vector<2x256xf32>
    %194 = arith.addf %189, %193 : vector<2x256xf32>
    %c58 = arith.constant 58 : index
    %195 = memref.load %arg1[%c58] : memref<98xf32, #tpu.memory_space<smem>>
    %c0_79 = arith.constant 0 : index
    %c95_80 = arith.constant 95 : index
    %196 = vector.load %arg6[%c0_79, %c95_80] : memref<2x512xf32, #tpu.memory_space<vmem>>, vector<2x256xf32>
    %197 = vector.broadcast %195 : f32 to vector<2x256xf32>
    %198 = arith.mulf %197, %196 : vector<2x256xf32>
    %199 = arith.addf %194, %198 : vector<2x256xf32>
    %c16 = arith.constant 16 : index
    %200 = memref.load %arg1[%c16] : memref<98xf32, #tpu.memory_space<smem>>
    %c0_81 = arith.constant 0 : index
    %c111 = arith.constant 111 : index
    %201 = vector.load %arg5[%c0_81, %c111] : memref<2x512xf32, #tpu.memory_space<vmem>>, vector<2x256xf32>
    %202 = vector.broadcast %200 : f32 to vector<2x256xf32>
    %203 = arith.mulf %202, %201 : vector<2x256xf32>
    %204 = arith.addf %199, %203 : vector<2x256xf32>
    %c65 = arith.constant 65 : index
    %205 = memref.load %arg1[%c65] : memref<98xf32, #tpu.memory_space<smem>>
    %c0_82 = arith.constant 0 : index
    %c111_83 = arith.constant 111 : index
    %206 = vector.load %arg6[%c0_82, %c111_83] : memref<2x512xf32, #tpu.memory_space<vmem>>, vector<2x256xf32>
    %207 = vector.broadcast %205 : f32 to vector<2x256xf32>
    %208 = arith.mulf %207, %206 : vector<2x256xf32>
    %209 = arith.addf %204, %208 : vector<2x256xf32>
    %c23 = arith.constant 23 : index
    %210 = memref.load %arg1[%c23] : memref<98xf32, #tpu.memory_space<smem>>
    %c0_84 = arith.constant 0 : index
    %c127 = arith.constant 127 : index
    %211 = vector.load %arg5[%c0_84, %c127] : memref<2x512xf32, #tpu.memory_space<vmem>>, vector<2x256xf32>
    %212 = vector.broadcast %210 : f32 to vector<2x256xf32>
    %213 = arith.mulf %212, %211 : vector<2x256xf32>
    %214 = arith.addf %209, %213 : vector<2x256xf32>
    %c72 = arith.constant 72 : index
    %215 = memref.load %arg1[%c72] : memref<98xf32, #tpu.memory_space<smem>>
    %c0_85 = arith.constant 0 : index
    %c127_86 = arith.constant 127 : index
    %216 = vector.load %arg6[%c0_85, %c127_86] : memref<2x512xf32, #tpu.memory_space<vmem>>, vector<2x256xf32>
    %217 = vector.broadcast %215 : f32 to vector<2x256xf32>
    %218 = arith.mulf %217, %216 : vector<2x256xf32>
    %219 = arith.addf %214, %218 : vector<2x256xf32>
    %c30 = arith.constant 30 : index
    %220 = memref.load %arg1[%c30] : memref<98xf32, #tpu.memory_space<smem>>
    %c0_87 = arith.constant 0 : index
    %c143 = arith.constant 143 : index
    %221 = vector.load %arg5[%c0_87, %c143] : memref<2x512xf32, #tpu.memory_space<vmem>>, vector<2x256xf32>
    %222 = vector.broadcast %220 : f32 to vector<2x256xf32>
    %223 = arith.mulf %222, %221 : vector<2x256xf32>
    %224 = arith.addf %219, %223 : vector<2x256xf32>
    %c79_88 = arith.constant 79 : index
    %225 = memref.load %arg1[%c79_88] : memref<98xf32, #tpu.memory_space<smem>>
    %c0_89 = arith.constant 0 : index
    %c143_90 = arith.constant 143 : index
    %226 = vector.load %arg6[%c0_89, %c143_90] : memref<2x512xf32, #tpu.memory_space<vmem>>, vector<2x256xf32>
    %227 = vector.broadcast %225 : f32 to vector<2x256xf32>
    %228 = arith.mulf %227, %226 : vector<2x256xf32>
    %229 = arith.addf %224, %228 : vector<2x256xf32>
    %c37 = arith.constant 37 : index
    %230 = memref.load %arg1[%c37] : memref<98xf32, #tpu.memory_space<smem>>
    %c0_91 = arith.constant 0 : index
    %c159 = arith.constant 159 : index
    %231 = vector.load %arg5[%c0_91, %c159] : memref<2x512xf32, #tpu.memory_space<vmem>>, vector<2x256xf32>
    %232 = vector.broadcast %230 : f32 to vector<2x256xf32>
    %233 = arith.mulf %232, %231 : vector<2x256xf32>
    %234 = arith.addf %229, %233 : vector<2x256xf32>
    %c86 = arith.constant 86 : index
    %235 = memref.load %arg1[%c86] : memref<98xf32, #tpu.memory_space<smem>>
    %c0_92 = arith.constant 0 : index
    %c159_93 = arith.constant 159 : index
    %236 = vector.load %arg6[%c0_92, %c159_93] : memref<2x512xf32, #tpu.memory_space<vmem>>, vector<2x256xf32>
    %237 = vector.broadcast %235 : f32 to vector<2x256xf32>
    %238 = arith.mulf %237, %236 : vector<2x256xf32>
    %239 = arith.addf %234, %238 : vector<2x256xf32>
    %c44 = arith.constant 44 : index
    %240 = memref.load %arg1[%c44] : memref<98xf32, #tpu.memory_space<smem>>
    %c0_94 = arith.constant 0 : index
    %c175 = arith.constant 175 : index
    %241 = vector.load %arg5[%c0_94, %c175] : memref<2x512xf32, #tpu.memory_space<vmem>>, vector<2x256xf32>
    %242 = vector.broadcast %240 : f32 to vector<2x256xf32>
    %243 = arith.mulf %242, %241 : vector<2x256xf32>
    %244 = arith.addf %239, %243 : vector<2x256xf32>
    %c93_95 = arith.constant 93 : index
    %245 = memref.load %arg1[%c93_95] : memref<98xf32, #tpu.memory_space<smem>>
    %c0_96 = arith.constant 0 : index
    %c175_97 = arith.constant 175 : index
    %246 = vector.load %arg6[%c0_96, %c175_97] : memref<2x512xf32, #tpu.memory_space<vmem>>, vector<2x256xf32>
    %247 = vector.broadcast %245 : f32 to vector<2x256xf32>
    %248 = arith.mulf %247, %246 : vector<2x256xf32>
    %249 = arith.addf %244, %248 : vector<2x256xf32>
    %c2_98 = arith.constant 2 : index
    %c0_99 = arith.constant 0 : index
    %250 = vector.load %arg2[%c2_98, %c0_99] : memref<7x256xf32, #tpu.memory_space<vmem>>, vector<1x256xf32>
    %251 = vector.shape_cast %250 : vector<1x256xf32> to vector<256xf32>
    %252 = vector.shape_cast %251 : vector<256xf32> to vector<1x256xf32>
    %253 = vector.broadcast %252 : vector<1x256xf32> to vector<2x256xf32>
    %254 = arith.mulf %253, %249 : vector<2x256xf32>
    %255 = arith.addf %178, %254 : vector<2x256xf32>
    %cst_100 = arith.constant 0.000000e+00 : f32
    %256 = vector.broadcast %cst_100 : f32 to vector<2x256xf32>
    %c3_101 = arith.constant 3 : index
    %257 = memref.load %arg1[%c3_101] : memref<98xf32, #tpu.memory_space<smem>>
    %c0_102 = arith.constant 0 : index
    %c80 = arith.constant 80 : index
    %258 = vector.load %arg5[%c0_102, %c80] : memref<2x512xf32, #tpu.memory_space<vmem>>, vector<2x256xf32>
    %259 = vector.broadcast %257 : f32 to vector<2x256xf32>
    %260 = arith.mulf %259, %258 : vector<2x256xf32>
    %261 = arith.addf %256, %260 : vector<2x256xf32>
    %c52 = arith.constant 52 : index
    %262 = memref.load %arg1[%c52] : memref<98xf32, #tpu.memory_space<smem>>
    %c0_103 = arith.constant 0 : index
    %c80_104 = arith.constant 80 : index
    %263 = vector.load %arg6[%c0_103, %c80_104] : memref<2x512xf32, #tpu.memory_space<vmem>>, vector<2x256xf32>
    %264 = vector.broadcast %262 : f32 to vector<2x256xf32>
    %265 = arith.mulf %264, %263 : vector<2x256xf32>
    %266 = arith.addf %261, %265 : vector<2x256xf32>
    %c10 = arith.constant 10 : index
    %267 = memref.load %arg1[%c10] : memref<98xf32, #tpu.memory_space<smem>>
    %c0_105 = arith.constant 0 : index
    %c96 = arith.constant 96 : index
    %268 = vector.load %arg5[%c0_105, %c96] : memref<2x512xf32, #tpu.memory_space<vmem>>, vector<2x256xf32>
    %269 = vector.broadcast %267 : f32 to vector<2x256xf32>
    %270 = arith.mulf %269, %268 : vector<2x256xf32>
    %271 = arith.addf %266, %270 : vector<2x256xf32>
    %c59 = arith.constant 59 : index
    %272 = memref.load %arg1[%c59] : memref<98xf32, #tpu.memory_space<smem>>
    %c0_106 = arith.constant 0 : index
    %c96_107 = arith.constant 96 : index
    %273 = vector.load %arg6[%c0_106, %c96_107] : memref<2x512xf32, #tpu.memory_space<vmem>>, vector<2x256xf32>
    %274 = vector.broadcast %272 : f32 to vector<2x256xf32>
    %275 = arith.mulf %274, %273 : vector<2x256xf32>
    %276 = arith.addf %271, %275 : vector<2x256xf32>
    %c17 = arith.constant 17 : index
    %277 = memref.load %arg1[%c17] : memref<98xf32, #tpu.memory_space<smem>>
    %c0_108 = arith.constant 0 : index
    %c112 = arith.constant 112 : index
    %278 = vector.load %arg5[%c0_108, %c112] : memref<2x512xf32, #tpu.memory_space<vmem>>, vector<2x256xf32>
    %279 = vector.broadcast %277 : f32 to vector<2x256xf32>
    %280 = arith.mulf %279, %278 : vector<2x256xf32>
    %281 = arith.addf %276, %280 : vector<2x256xf32>
    %c66 = arith.constant 66 : index
    %282 = memref.load %arg1[%c66] : memref<98xf32, #tpu.memory_space<smem>>
    %c0_109 = arith.constant 0 : index
    %c112_110 = arith.constant 112 : index
    %283 = vector.load %arg6[%c0_109, %c112_110] : memref<2x512xf32, #tpu.memory_space<vmem>>, vector<2x256xf32>
    %284 = vector.broadcast %282 : f32 to vector<2x256xf32>
    %285 = arith.mulf %284, %283 : vector<2x256xf32>
    %286 = arith.addf %281, %285 : vector<2x256xf32>
    %c24 = arith.constant 24 : index
    %287 = memref.load %arg1[%c24] : memref<98xf32, #tpu.memory_space<smem>>
    %c0_111 = arith.constant 0 : index
    %c128_112 = arith.constant 128 : index
    %288 = vector.load %arg5[%c0_111, %c128_112] : memref<2x512xf32, #tpu.memory_space<vmem>>, vector<2x256xf32>
    %289 = vector.broadcast %287 : f32 to vector<2x256xf32>
    %290 = arith.mulf %289, %288 : vector<2x256xf32>
    %291 = arith.addf %286, %290 : vector<2x256xf32>
    %c73 = arith.constant 73 : index
    %292 = memref.load %arg1[%c73] : memref<98xf32, #tpu.memory_space<smem>>
    %c0_113 = arith.constant 0 : index
    %c128_114 = arith.constant 128 : index
    %293 = vector.load %arg6[%c0_113, %c128_114] : memref<2x512xf32, #tpu.memory_space<vmem>>, vector<2x256xf32>
    %294 = vector.broadcast %292 : f32 to vector<2x256xf32>
    %295 = arith.mulf %294, %293 : vector<2x256xf32>
    %296 = arith.addf %291, %295 : vector<2x256xf32>
    %c31 = arith.constant 31 : index
    %297 = memref.load %arg1[%c31] : memref<98xf32, #tpu.memory_space<smem>>
    %c0_115 = arith.constant 0 : index
    %c144 = arith.constant 144 : index
    %298 = vector.load %arg5[%c0_115, %c144] : memref<2x512xf32, #tpu.memory_space<vmem>>, vector<2x256xf32>
    %299 = vector.broadcast %297 : f32 to vector<2x256xf32>
    %300 = arith.mulf %299, %298 : vector<2x256xf32>
    %301 = arith.addf %296, %300 : vector<2x256xf32>
    %c80_116 = arith.constant 80 : index
    %302 = memref.load %arg1[%c80_116] : memref<98xf32, #tpu.memory_space<smem>>
    %c0_117 = arith.constant 0 : index
    %c144_118 = arith.constant 144 : index
    %303 = vector.load %arg6[%c0_117, %c144_118] : memref<2x512xf32, #tpu.memory_space<vmem>>, vector<2x256xf32>
    %304 = vector.broadcast %302 : f32 to vector<2x256xf32>
    %305 = arith.mulf %304, %303 : vector<2x256xf32>
    %306 = arith.addf %301, %305 : vector<2x256xf32>
    %c38 = arith.constant 38 : index
    %307 = memref.load %arg1[%c38] : memref<98xf32, #tpu.memory_space<smem>>
    %c0_119 = arith.constant 0 : index
    %c160 = arith.constant 160 : index
    %308 = vector.load %arg5[%c0_119, %c160] : memref<2x512xf32, #tpu.memory_space<vmem>>, vector<2x256xf32>
    %309 = vector.broadcast %307 : f32 to vector<2x256xf32>
    %310 = arith.mulf %309, %308 : vector<2x256xf32>
    %311 = arith.addf %306, %310 : vector<2x256xf32>
    %c87 = arith.constant 87 : index
    %312 = memref.load %arg1[%c87] : memref<98xf32, #tpu.memory_space<smem>>
    %c0_120 = arith.constant 0 : index
    %c160_121 = arith.constant 160 : index
    %313 = vector.load %arg6[%c0_120, %c160_121] : memref<2x512xf32, #tpu.memory_space<vmem>>, vector<2x256xf32>
    %314 = vector.broadcast %312 : f32 to vector<2x256xf32>
    %315 = arith.mulf %314, %313 : vector<2x256xf32>
    %316 = arith.addf %311, %315 : vector<2x256xf32>
    %c45 = arith.constant 45 : index
    %317 = memref.load %arg1[%c45] : memref<98xf32, #tpu.memory_space<smem>>
    %c0_122 = arith.constant 0 : index
    %c176 = arith.constant 176 : index
    %318 = vector.load %arg5[%c0_122, %c176] : memref<2x512xf32, #tpu.memory_space<vmem>>, vector<2x256xf32>
    %319 = vector.broadcast %317 : f32 to vector<2x256xf32>
    %320 = arith.mulf %319, %318 : vector<2x256xf32>
    %321 = arith.addf %316, %320 : vector<2x256xf32>
    %c94_123 = arith.constant 94 : index
    %322 = memref.load %arg1[%c94_123] : memref<98xf32, #tpu.memory_space<smem>>
    %c0_124 = arith.constant 0 : index
    %c176_125 = arith.constant 176 : index
    %323 = vector.load %arg6[%c0_124, %c176_125] : memref<2x512xf32, #tpu.memory_space<vmem>>, vector<2x256xf32>
    %324 = vector.broadcast %322 : f32 to vector<2x256xf32>
    %325 = arith.mulf %324, %323 : vector<2x256xf32>
    %326 = arith.addf %321, %325 : vector<2x256xf32>
    %c3_126 = arith.constant 3 : index
    %c0_127 = arith.constant 0 : index
    %327 = vector.load %arg2[%c3_126, %c0_127] : memref<7x256xf32, #tpu.memory_space<vmem>>, vector<1x256xf32>
    %328 = vector.shape_cast %327 : vector<1x256xf32> to vector<256xf32>
    %329 = vector.shape_cast %328 : vector<256xf32> to vector<1x256xf32>
    %330 = vector.broadcast %329 : vector<1x256xf32> to vector<2x256xf32>
    %331 = arith.mulf %330, %326 : vector<2x256xf32>
    %332 = arith.addf %255, %331 : vector<2x256xf32>
    %cst_128 = arith.constant 0.000000e+00 : f32
    %333 = vector.broadcast %cst_128 : f32 to vector<2x256xf32>
    %c4 = arith.constant 4 : index
    %334 = memref.load %arg1[%c4] : memref<98xf32, #tpu.memory_space<smem>>
    %c0_129 = arith.constant 0 : index
    %c81 = arith.constant 81 : index
    %335 = vector.load %arg5[%c0_129, %c81] : memref<2x512xf32, #tpu.memory_space<vmem>>, vector<2x256xf32>
    %336 = vector.broadcast %334 : f32 to vector<2x256xf32>
    %337 = arith.mulf %336, %335 : vector<2x256xf32>
    %338 = arith.addf %333, %337 : vector<2x256xf32>
    %c53 = arith.constant 53 : index
    %339 = memref.load %arg1[%c53] : memref<98xf32, #tpu.memory_space<smem>>
    %c0_130 = arith.constant 0 : index
    %c81_131 = arith.constant 81 : index
    %340 = vector.load %arg6[%c0_130, %c81_131] : memref<2x512xf32, #tpu.memory_space<vmem>>, vector<2x256xf32>
    %341 = vector.broadcast %339 : f32 to vector<2x256xf32>
    %342 = arith.mulf %341, %340 : vector<2x256xf32>
    %343 = arith.addf %338, %342 : vector<2x256xf32>
    %c11 = arith.constant 11 : index
    %344 = memref.load %arg1[%c11] : memref<98xf32, #tpu.memory_space<smem>>
    %c0_132 = arith.constant 0 : index
    %c97 = arith.constant 97 : index
    %345 = vector.load %arg5[%c0_132, %c97] : memref<2x512xf32, #tpu.memory_space<vmem>>, vector<2x256xf32>
    %346 = vector.broadcast %344 : f32 to vector<2x256xf32>
    %347 = arith.mulf %346, %345 : vector<2x256xf32>
    %348 = arith.addf %343, %347 : vector<2x256xf32>
    %c60 = arith.constant 60 : index
    %349 = memref.load %arg1[%c60] : memref<98xf32, #tpu.memory_space<smem>>
    %c0_133 = arith.constant 0 : index
    %c97_134 = arith.constant 97 : index
    %350 = vector.load %arg6[%c0_133, %c97_134] : memref<2x512xf32, #tpu.memory_space<vmem>>, vector<2x256xf32>
    %351 = vector.broadcast %349 : f32 to vector<2x256xf32>
    %352 = arith.mulf %351, %350 : vector<2x256xf32>
    %353 = arith.addf %348, %352 : vector<2x256xf32>
    %c18 = arith.constant 18 : index
    %354 = memref.load %arg1[%c18] : memref<98xf32, #tpu.memory_space<smem>>
    %c0_135 = arith.constant 0 : index
    %c113 = arith.constant 113 : index
    %355 = vector.load %arg5[%c0_135, %c113] : memref<2x512xf32, #tpu.memory_space<vmem>>, vector<2x256xf32>
    %356 = vector.broadcast %354 : f32 to vector<2x256xf32>
    %357 = arith.mulf %356, %355 : vector<2x256xf32>
    %358 = arith.addf %353, %357 : vector<2x256xf32>
    %c67 = arith.constant 67 : index
    %359 = memref.load %arg1[%c67] : memref<98xf32, #tpu.memory_space<smem>>
    %c0_136 = arith.constant 0 : index
    %c113_137 = arith.constant 113 : index
    %360 = vector.load %arg6[%c0_136, %c113_137] : memref<2x512xf32, #tpu.memory_space<vmem>>, vector<2x256xf32>
    %361 = vector.broadcast %359 : f32 to vector<2x256xf32>
    %362 = arith.mulf %361, %360 : vector<2x256xf32>
    %363 = arith.addf %358, %362 : vector<2x256xf32>
    %c25 = arith.constant 25 : index
    %364 = memref.load %arg1[%c25] : memref<98xf32, #tpu.memory_space<smem>>
    %c0_138 = arith.constant 0 : index
    %c129 = arith.constant 129 : index
    %365 = vector.load %arg5[%c0_138, %c129] : memref<2x512xf32, #tpu.memory_space<vmem>>, vector<2x256xf32>
    %366 = vector.broadcast %364 : f32 to vector<2x256xf32>
    %367 = arith.mulf %366, %365 : vector<2x256xf32>
    %368 = arith.addf %363, %367 : vector<2x256xf32>
    %c74 = arith.constant 74 : index
    %369 = memref.load %arg1[%c74] : memref<98xf32, #tpu.memory_space<smem>>
    %c0_139 = arith.constant 0 : index
    %c129_140 = arith.constant 129 : index
    %370 = vector.load %arg6[%c0_139, %c129_140] : memref<2x512xf32, #tpu.memory_space<vmem>>, vector<2x256xf32>
    %371 = vector.broadcast %369 : f32 to vector<2x256xf32>
    %372 = arith.mulf %371, %370 : vector<2x256xf32>
    %373 = arith.addf %368, %372 : vector<2x256xf32>
    %c32 = arith.constant 32 : index
    %374 = memref.load %arg1[%c32] : memref<98xf32, #tpu.memory_space<smem>>
    %c0_141 = arith.constant 0 : index
    %c145 = arith.constant 145 : index
    %375 = vector.load %arg5[%c0_141, %c145] : memref<2x512xf32, #tpu.memory_space<vmem>>, vector<2x256xf32>
    %376 = vector.broadcast %374 : f32 to vector<2x256xf32>
    %377 = arith.mulf %376, %375 : vector<2x256xf32>
    %378 = arith.addf %373, %377 : vector<2x256xf32>
    %c81_142 = arith.constant 81 : index
    %379 = memref.load %arg1[%c81_142] : memref<98xf32, #tpu.memory_space<smem>>
    %c0_143 = arith.constant 0 : index
    %c145_144 = arith.constant 145 : index
    %380 = vector.load %arg6[%c0_143, %c145_144] : memref<2x512xf32, #tpu.memory_space<vmem>>, vector<2x256xf32>
    %381 = vector.broadcast %379 : f32 to vector<2x256xf32>
    %382 = arith.mulf %381, %380 : vector<2x256xf32>
    %383 = arith.addf %378, %382 : vector<2x256xf32>
    %c39 = arith.constant 39 : index
    %384 = memref.load %arg1[%c39] : memref<98xf32, #tpu.memory_space<smem>>
    %c0_145 = arith.constant 0 : index
    %c161 = arith.constant 161 : index
    %385 = vector.load %arg5[%c0_145, %c161] : memref<2x512xf32, #tpu.memory_space<vmem>>, vector<2x256xf32>
    %386 = vector.broadcast %384 : f32 to vector<2x256xf32>
    %387 = arith.mulf %386, %385 : vector<2x256xf32>
    %388 = arith.addf %383, %387 : vector<2x256xf32>
    %c88 = arith.constant 88 : index
    %389 = memref.load %arg1[%c88] : memref<98xf32, #tpu.memory_space<smem>>
    %c0_146 = arith.constant 0 : index
    %c161_147 = arith.constant 161 : index
    %390 = vector.load %arg6[%c0_146, %c161_147] : memref<2x512xf32, #tpu.memory_space<vmem>>, vector<2x256xf32>
    %391 = vector.broadcast %389 : f32 to vector<2x256xf32>
    %392 = arith.mulf %391, %390 : vector<2x256xf32>
    %393 = arith.addf %388, %392 : vector<2x256xf32>
    %c46 = arith.constant 46 : index
    %394 = memref.load %arg1[%c46] : memref<98xf32, #tpu.memory_space<smem>>
    %c0_148 = arith.constant 0 : index
    %c177 = arith.constant 177 : index
    %395 = vector.load %arg5[%c0_148, %c177] : memref<2x512xf32, #tpu.memory_space<vmem>>, vector<2x256xf32>
    %396 = vector.broadcast %394 : f32 to vector<2x256xf32>
    %397 = arith.mulf %396, %395 : vector<2x256xf32>
    %398 = arith.addf %393, %397 : vector<2x256xf32>
    %c95_149 = arith.constant 95 : index
    %399 = memref.load %arg1[%c95_149] : memref<98xf32, #tpu.memory_space<smem>>
    %c0_150 = arith.constant 0 : index
    %c177_151 = arith.constant 177 : index
    %400 = vector.load %arg6[%c0_150, %c177_151] : memref<2x512xf32, #tpu.memory_space<vmem>>, vector<2x256xf32>
    %401 = vector.broadcast %399 : f32 to vector<2x256xf32>
    %402 = arith.mulf %401, %400 : vector<2x256xf32>
    %403 = arith.addf %398, %402 : vector<2x256xf32>
    %c4_152 = arith.constant 4 : index
    %c0_153 = arith.constant 0 : index
    %404 = vector.load %arg2[%c4_152, %c0_153] : memref<7x256xf32, #tpu.memory_space<vmem>>, vector<1x256xf32>
    %405 = vector.shape_cast %404 : vector<1x256xf32> to vector<256xf32>
    %406 = vector.shape_cast %405 : vector<256xf32> to vector<1x256xf32>
    %407 = vector.broadcast %406 : vector<1x256xf32> to vector<2x256xf32>
    %408 = arith.mulf %407, %403 : vector<2x256xf32>
    %409 = arith.addf %332, %408 : vector<2x256xf32>
    %cst_154 = arith.constant 0.000000e+00 : f32
    %410 = vector.broadcast %cst_154 : f32 to vector<2x256xf32>
    %c5 = arith.constant 5 : index
    %411 = memref.load %arg1[%c5] : memref<98xf32, #tpu.memory_space<smem>>
    %c0_155 = arith.constant 0 : index
    %c82 = arith.constant 82 : index
    %412 = vector.load %arg5[%c0_155, %c82] : memref<2x512xf32, #tpu.memory_space<vmem>>, vector<2x256xf32>
    %413 = vector.broadcast %411 : f32 to vector<2x256xf32>
    %414 = arith.mulf %413, %412 : vector<2x256xf32>
    %415 = arith.addf %410, %414 : vector<2x256xf32>
    %c54 = arith.constant 54 : index
    %416 = memref.load %arg1[%c54] : memref<98xf32, #tpu.memory_space<smem>>
    %c0_156 = arith.constant 0 : index
    %c82_157 = arith.constant 82 : index
    %417 = vector.load %arg6[%c0_156, %c82_157] : memref<2x512xf32, #tpu.memory_space<vmem>>, vector<2x256xf32>
    %418 = vector.broadcast %416 : f32 to vector<2x256xf32>
    %419 = arith.mulf %418, %417 : vector<2x256xf32>
    %420 = arith.addf %415, %419 : vector<2x256xf32>
    %c12 = arith.constant 12 : index
    %421 = memref.load %arg1[%c12] : memref<98xf32, #tpu.memory_space<smem>>
    %c0_158 = arith.constant 0 : index
    %c98 = arith.constant 98 : index
    %422 = vector.load %arg5[%c0_158, %c98] : memref<2x512xf32, #tpu.memory_space<vmem>>, vector<2x256xf32>
    %423 = vector.broadcast %421 : f32 to vector<2x256xf32>
    %424 = arith.mulf %423, %422 : vector<2x256xf32>
    %425 = arith.addf %420, %424 : vector<2x256xf32>
    %c61 = arith.constant 61 : index
    %426 = memref.load %arg1[%c61] : memref<98xf32, #tpu.memory_space<smem>>
    %c0_159 = arith.constant 0 : index
    %c98_160 = arith.constant 98 : index
    %427 = vector.load %arg6[%c0_159, %c98_160] : memref<2x512xf32, #tpu.memory_space<vmem>>, vector<2x256xf32>
    %428 = vector.broadcast %426 : f32 to vector<2x256xf32>
    %429 = arith.mulf %428, %427 : vector<2x256xf32>
    %430 = arith.addf %425, %429 : vector<2x256xf32>
    %c19 = arith.constant 19 : index
    %431 = memref.load %arg1[%c19] : memref<98xf32, #tpu.memory_space<smem>>
    %c0_161 = arith.constant 0 : index
    %c114 = arith.constant 114 : index
    %432 = vector.load %arg5[%c0_161, %c114] : memref<2x512xf32, #tpu.memory_space<vmem>>, vector<2x256xf32>
    %433 = vector.broadcast %431 : f32 to vector<2x256xf32>
    %434 = arith.mulf %433, %432 : vector<2x256xf32>
    %435 = arith.addf %430, %434 : vector<2x256xf32>
    %c68 = arith.constant 68 : index
    %436 = memref.load %arg1[%c68] : memref<98xf32, #tpu.memory_space<smem>>
    %c0_162 = arith.constant 0 : index
    %c114_163 = arith.constant 114 : index
    %437 = vector.load %arg6[%c0_162, %c114_163] : memref<2x512xf32, #tpu.memory_space<vmem>>, vector<2x256xf32>
    %438 = vector.broadcast %436 : f32 to vector<2x256xf32>
    %439 = arith.mulf %438, %437 : vector<2x256xf32>
    %440 = arith.addf %435, %439 : vector<2x256xf32>
    %c26 = arith.constant 26 : index
    %441 = memref.load %arg1[%c26] : memref<98xf32, #tpu.memory_space<smem>>
    %c0_164 = arith.constant 0 : index
    %c130 = arith.constant 130 : index
    %442 = vector.load %arg5[%c0_164, %c130] : memref<2x512xf32, #tpu.memory_space<vmem>>, vector<2x256xf32>
    %443 = vector.broadcast %441 : f32 to vector<2x256xf32>
    %444 = arith.mulf %443, %442 : vector<2x256xf32>
    %445 = arith.addf %440, %444 : vector<2x256xf32>
    %c75 = arith.constant 75 : index
    %446 = memref.load %arg1[%c75] : memref<98xf32, #tpu.memory_space<smem>>
    %c0_165 = arith.constant 0 : index
    %c130_166 = arith.constant 130 : index
    %447 = vector.load %arg6[%c0_165, %c130_166] : memref<2x512xf32, #tpu.memory_space<vmem>>, vector<2x256xf32>
    %448 = vector.broadcast %446 : f32 to vector<2x256xf32>
    %449 = arith.mulf %448, %447 : vector<2x256xf32>
    %450 = arith.addf %445, %449 : vector<2x256xf32>
    %c33 = arith.constant 33 : index
    %451 = memref.load %arg1[%c33] : memref<98xf32, #tpu.memory_space<smem>>
    %c0_167 = arith.constant 0 : index
    %c146 = arith.constant 146 : index
    %452 = vector.load %arg5[%c0_167, %c146] : memref<2x512xf32, #tpu.memory_space<vmem>>, vector<2x256xf32>
    %453 = vector.broadcast %451 : f32 to vector<2x256xf32>
    %454 = arith.mulf %453, %452 : vector<2x256xf32>
    %455 = arith.addf %450, %454 : vector<2x256xf32>
    %c82_168 = arith.constant 82 : index
    %456 = memref.load %arg1[%c82_168] : memref<98xf32, #tpu.memory_space<smem>>
    %c0_169 = arith.constant 0 : index
    %c146_170 = arith.constant 146 : index
    %457 = vector.load %arg6[%c0_169, %c146_170] : memref<2x512xf32, #tpu.memory_space<vmem>>, vector<2x256xf32>
    %458 = vector.broadcast %456 : f32 to vector<2x256xf32>
    %459 = arith.mulf %458, %457 : vector<2x256xf32>
    %460 = arith.addf %455, %459 : vector<2x256xf32>
    %c40 = arith.constant 40 : index
    %461 = memref.load %arg1[%c40] : memref<98xf32, #tpu.memory_space<smem>>
    %c0_171 = arith.constant 0 : index
    %c162 = arith.constant 162 : index
    %462 = vector.load %arg5[%c0_171, %c162] : memref<2x512xf32, #tpu.memory_space<vmem>>, vector<2x256xf32>
    %463 = vector.broadcast %461 : f32 to vector<2x256xf32>
    %464 = arith.mulf %463, %462 : vector<2x256xf32>
    %465 = arith.addf %460, %464 : vector<2x256xf32>
    %c89 = arith.constant 89 : index
    %466 = memref.load %arg1[%c89] : memref<98xf32, #tpu.memory_space<smem>>
    %c0_172 = arith.constant 0 : index
    %c162_173 = arith.constant 162 : index
    %467 = vector.load %arg6[%c0_172, %c162_173] : memref<2x512xf32, #tpu.memory_space<vmem>>, vector<2x256xf32>
    %468 = vector.broadcast %466 : f32 to vector<2x256xf32>
    %469 = arith.mulf %468, %467 : vector<2x256xf32>
    %470 = arith.addf %465, %469 : vector<2x256xf32>
    %c47 = arith.constant 47 : index
    %471 = memref.load %arg1[%c47] : memref<98xf32, #tpu.memory_space<smem>>
    %c0_174 = arith.constant 0 : index
    %c178 = arith.constant 178 : index
    %472 = vector.load %arg5[%c0_174, %c178] : memref<2x512xf32, #tpu.memory_space<vmem>>, vector<2x256xf32>
    %473 = vector.broadcast %471 : f32 to vector<2x256xf32>
    %474 = arith.mulf %473, %472 : vector<2x256xf32>
    %475 = arith.addf %470, %474 : vector<2x256xf32>
    %c96_175 = arith.constant 96 : index
    %476 = memref.load %arg1[%c96_175] : memref<98xf32, #tpu.memory_space<smem>>
    %c0_176 = arith.constant 0 : index
    %c178_177 = arith.constant 178 : index
    %477 = vector.load %arg6[%c0_176, %c178_177] : memref<2x512xf32, #tpu.memory_space<vmem>>, vector<2x256xf32>
    %478 = vector.broadcast %476 : f32 to vector<2x256xf32>
    %479 = arith.mulf %478, %477 : vector<2x256xf32>
    %480 = arith.addf %475, %479 : vector<2x256xf32>
    %c5_178 = arith.constant 5 : index
    %c0_179 = arith.constant 0 : index
    %481 = vector.load %arg2[%c5_178, %c0_179] : memref<7x256xf32, #tpu.memory_space<vmem>>, vector<1x256xf32>
    %482 = vector.shape_cast %481 : vector<1x256xf32> to vector<256xf32>
    %483 = vector.shape_cast %482 : vector<256xf32> to vector<1x256xf32>
    %484 = vector.broadcast %483 : vector<1x256xf32> to vector<2x256xf32>
    %485 = arith.mulf %484, %480 : vector<2x256xf32>
    %486 = arith.addf %409, %485 : vector<2x256xf32>
    %cst_180 = arith.constant 0.000000e+00 : f32
    %487 = vector.broadcast %cst_180 : f32 to vector<2x256xf32>
    %c6 = arith.constant 6 : index
    %488 = memref.load %arg1[%c6] : memref<98xf32, #tpu.memory_space<smem>>
    %c0_181 = arith.constant 0 : index
    %c83 = arith.constant 83 : index
    %489 = vector.load %arg5[%c0_181, %c83] : memref<2x512xf32, #tpu.memory_space<vmem>>, vector<2x256xf32>
    %490 = vector.broadcast %488 : f32 to vector<2x256xf32>
    %491 = arith.mulf %490, %489 : vector<2x256xf32>
    %492 = arith.addf %487, %491 : vector<2x256xf32>
    %c55 = arith.constant 55 : index
    %493 = memref.load %arg1[%c55] : memref<98xf32, #tpu.memory_space<smem>>
    %c0_182 = arith.constant 0 : index
    %c83_183 = arith.constant 83 : index
    %494 = vector.load %arg6[%c0_182, %c83_183] : memref<2x512xf32, #tpu.memory_space<vmem>>, vector<2x256xf32>
    %495 = vector.broadcast %493 : f32 to vector<2x256xf32>
    %496 = arith.mulf %495, %494 : vector<2x256xf32>
    %497 = arith.addf %492, %496 : vector<2x256xf32>
    %c13 = arith.constant 13 : index
    %498 = memref.load %arg1[%c13] : memref<98xf32, #tpu.memory_space<smem>>
    %c0_184 = arith.constant 0 : index
    %c99 = arith.constant 99 : index
    %499 = vector.load %arg5[%c0_184, %c99] : memref<2x512xf32, #tpu.memory_space<vmem>>, vector<2x256xf32>
    %500 = vector.broadcast %498 : f32 to vector<2x256xf32>
    %501 = arith.mulf %500, %499 : vector<2x256xf32>
    %502 = arith.addf %497, %501 : vector<2x256xf32>
    %c62 = arith.constant 62 : index
    %503 = memref.load %arg1[%c62] : memref<98xf32, #tpu.memory_space<smem>>
    %c0_185 = arith.constant 0 : index
    %c99_186 = arith.constant 99 : index
    %504 = vector.load %arg6[%c0_185, %c99_186] : memref<2x512xf32, #tpu.memory_space<vmem>>, vector<2x256xf32>
    %505 = vector.broadcast %503 : f32 to vector<2x256xf32>
    %506 = arith.mulf %505, %504 : vector<2x256xf32>
    %507 = arith.addf %502, %506 : vector<2x256xf32>
    %c20 = arith.constant 20 : index
    %508 = memref.load %arg1[%c20] : memref<98xf32, #tpu.memory_space<smem>>
    %c0_187 = arith.constant 0 : index
    %c115 = arith.constant 115 : index
    %509 = vector.load %arg5[%c0_187, %c115] : memref<2x512xf32, #tpu.memory_space<vmem>>, vector<2x256xf32>
    %510 = vector.broadcast %508 : f32 to vector<2x256xf32>
    %511 = arith.mulf %510, %509 : vector<2x256xf32>
    %512 = arith.addf %507, %511 : vector<2x256xf32>
    %c69 = arith.constant 69 : index
    %513 = memref.load %arg1[%c69] : memref<98xf32, #tpu.memory_space<smem>>
    %c0_188 = arith.constant 0 : index
    %c115_189 = arith.constant 115 : index
    %514 = vector.load %arg6[%c0_188, %c115_189] : memref<2x512xf32, #tpu.memory_space<vmem>>, vector<2x256xf32>
    %515 = vector.broadcast %513 : f32 to vector<2x256xf32>
    %516 = arith.mulf %515, %514 : vector<2x256xf32>
    %517 = arith.addf %512, %516 : vector<2x256xf32>
    %c27 = arith.constant 27 : index
    %518 = memref.load %arg1[%c27] : memref<98xf32, #tpu.memory_space<smem>>
    %c0_190 = arith.constant 0 : index
    %c131 = arith.constant 131 : index
    %519 = vector.load %arg5[%c0_190, %c131] : memref<2x512xf32, #tpu.memory_space<vmem>>, vector<2x256xf32>
    %520 = vector.broadcast %518 : f32 to vector<2x256xf32>
    %521 = arith.mulf %520, %519 : vector<2x256xf32>
    %522 = arith.addf %517, %521 : vector<2x256xf32>
    %c76 = arith.constant 76 : index
    %523 = memref.load %arg1[%c76] : memref<98xf32, #tpu.memory_space<smem>>
    %c0_191 = arith.constant 0 : index
    %c131_192 = arith.constant 131 : index
    %524 = vector.load %arg6[%c0_191, %c131_192] : memref<2x512xf32, #tpu.memory_space<vmem>>, vector<2x256xf32>
    %525 = vector.broadcast %523 : f32 to vector<2x256xf32>
    %526 = arith.mulf %525, %524 : vector<2x256xf32>
    %527 = arith.addf %522, %526 : vector<2x256xf32>
    %c34 = arith.constant 34 : index
    %528 = memref.load %arg1[%c34] : memref<98xf32, #tpu.memory_space<smem>>
    %c0_193 = arith.constant 0 : index
    %c147 = arith.constant 147 : index
    %529 = vector.load %arg5[%c0_193, %c147] : memref<2x512xf32, #tpu.memory_space<vmem>>, vector<2x256xf32>
    %530 = vector.broadcast %528 : f32 to vector<2x256xf32>
    %531 = arith.mulf %530, %529 : vector<2x256xf32>
    %532 = arith.addf %527, %531 : vector<2x256xf32>
    %c83_194 = arith.constant 83 : index
    %533 = memref.load %arg1[%c83_194] : memref<98xf32, #tpu.memory_space<smem>>
    %c0_195 = arith.constant 0 : index
    %c147_196 = arith.constant 147 : index
    %534 = vector.load %arg6[%c0_195, %c147_196] : memref<2x512xf32, #tpu.memory_space<vmem>>, vector<2x256xf32>
    %535 = vector.broadcast %533 : f32 to vector<2x256xf32>
    %536 = arith.mulf %535, %534 : vector<2x256xf32>
    %537 = arith.addf %532, %536 : vector<2x256xf32>
    %c41 = arith.constant 41 : index
    %538 = memref.load %arg1[%c41] : memref<98xf32, #tpu.memory_space<smem>>
    %c0_197 = arith.constant 0 : index
    %c163 = arith.constant 163 : index
    %539 = vector.load %arg5[%c0_197, %c163] : memref<2x512xf32, #tpu.memory_space<vmem>>, vector<2x256xf32>
    %540 = vector.broadcast %538 : f32 to vector<2x256xf32>
    %541 = arith.mulf %540, %539 : vector<2x256xf32>
    %542 = arith.addf %537, %541 : vector<2x256xf32>
    %c90 = arith.constant 90 : index
    %543 = memref.load %arg1[%c90] : memref<98xf32, #tpu.memory_space<smem>>
    %c0_198 = arith.constant 0 : index
    %c163_199 = arith.constant 163 : index
    %544 = vector.load %arg6[%c0_198, %c163_199] : memref<2x512xf32, #tpu.memory_space<vmem>>, vector<2x256xf32>
    %545 = vector.broadcast %543 : f32 to vector<2x256xf32>
    %546 = arith.mulf %545, %544 : vector<2x256xf32>
    %547 = arith.addf %542, %546 : vector<2x256xf32>
    %c48 = arith.constant 48 : index
    %548 = memref.load %arg1[%c48] : memref<98xf32, #tpu.memory_space<smem>>
    %c0_200 = arith.constant 0 : index
    %c179 = arith.constant 179 : index
    %549 = vector.load %arg5[%c0_200, %c179] : memref<2x512xf32, #tpu.memory_space<vmem>>, vector<2x256xf32>
    %550 = vector.broadcast %548 : f32 to vector<2x256xf32>
    %551 = arith.mulf %550, %549 : vector<2x256xf32>
    %552 = arith.addf %547, %551 : vector<2x256xf32>
    %c97_201 = arith.constant 97 : index
    %553 = memref.load %arg1[%c97_201] : memref<98xf32, #tpu.memory_space<smem>>
    %c0_202 = arith.constant 0 : index
    %c179_203 = arith.constant 179 : index
    %554 = vector.load %arg6[%c0_202, %c179_203] : memref<2x512xf32, #tpu.memory_space<vmem>>, vector<2x256xf32>
    %555 = vector.broadcast %553 : f32 to vector<2x256xf32>
    %556 = arith.mulf %555, %554 : vector<2x256xf32>
    %557 = arith.addf %552, %556 : vector<2x256xf32>
    %c6_204 = arith.constant 6 : index
    %c0_205 = arith.constant 0 : index
    %558 = vector.load %arg2[%c6_204, %c0_205] : memref<7x256xf32, #tpu.memory_space<vmem>>, vector<1x256xf32>
    %559 = vector.shape_cast %558 : vector<1x256xf32> to vector<256xf32>
    %560 = vector.shape_cast %559 : vector<256xf32> to vector<1x256xf32>
    %561 = vector.broadcast %560 : vector<1x256xf32> to vector<2x256xf32>
    %562 = arith.mulf %561, %557 : vector<2x256xf32>
    %563 = arith.addf %486, %562 : vector<2x256xf32>
    %564 = arith.negf %563 : vector<2x256xf32>
    %565 = math.exp %564 : vector<2x256xf32>
    %cst_206 = arith.constant 1.000000e+00 : f32
    %566 = vector.broadcast %cst_206 : f32 to vector<2x256xf32>
    %567 = arith.addf %566, %565 : vector<2x256xf32>
    %568 = arith.divf %566, %567 : vector<2x256xf32>
    %c0_207 = arith.constant 0 : index
    %c0_208 = arith.constant 0 : index
    %c0_209 = arith.constant 0 : index
    %569 = vector.load %arg3[%c0_207, %c0_208, %c0_209] : memref<2x4x256xf32, #tpu.memory_space<vmem>>, vector<2x1x256xf32>
    %570 = vector.shape_cast %569 : vector<2x1x256xf32> to vector<2x256xf32>
    %571 = arith.mulf %570, %568 : vector<2x256xf32>
    %c0_210 = arith.constant 0 : index
    %c0_211 = arith.constant 0 : index
    %c0_212 = arith.constant 0 : index
    %572 = vector.load %arg4[%c0_210, %c0_211, %c0_212] : memref<2x4x256xf32, #tpu.memory_space<vmem>>, vector<2x1x256xf32>
    %573 = vector.shape_cast %572 : vector<2x1x256xf32> to vector<2x256xf32>
    %574 = vector.shape_cast %571 : vector<2x256xf32> to vector<2x1x256xf32>
    tpu.vector_store %arg4[%c0_210, %c0_211, %c0_212], %574 {strides = array<i32>} : memref<2x4x256xf32, #tpu.memory_space<vmem>>, vector<2x1x256xf32>,
    %c0_213 = arith.constant 0 : index
    %c1_214 = arith.constant 1 : index
    %c0_215 = arith.constant 0 : index
    %575 = vector.load %arg3[%c0_213, %c1_214, %c0_215] : memref<2x4x256xf32, #tpu.memory_space<vmem>>, vector<2x1x256xf32>
    %576 = vector.shape_cast %575 : vector<2x1x256xf32> to vector<2x256xf32>
    %577 = arith.mulf %576, %568 : vector<2x256xf32>
    %c0_216 = arith.constant 0 : index
    %c1_217 = arith.constant 1 : index
    %c0_218 = arith.constant 0 : index
    %578 = vector.load %arg4[%c0_216, %c1_217, %c0_218] : memref<2x4x256xf32, #tpu.memory_space<vmem>>, vector<2x1x256xf32>
    %579 = vector.shape_cast %578 : vector<2x1x256xf32> to vector<2x256xf32>
    %580 = vector.shape_cast %577 : vector<2x256xf32> to vector<2x1x256xf32>
    tpu.vector_store %arg4[%c0_216, %c1_217, %c0_218], %580 {strides = array<i32>} : memref<2x4x256xf32, #tpu.memory_space<vmem>>, vector<2x1x256xf32>,
    %c0_219 = arith.constant 0 : index
    %c2_220 = arith.constant 2 : index
    %c0_221 = arith.constant 0 : index
    %581 = vector.load %arg3[%c0_219, %c2_220, %c0_221] : memref<2x4x256xf32, #tpu.memory_space<vmem>>, vector<2x1x256xf32>
    %582 = vector.shape_cast %581 : vector<2x1x256xf32> to vector<2x256xf32>
    %583 = arith.mulf %582, %568 : vector<2x256xf32>
    %c0_222 = arith.constant 0 : index
    %c2_223 = arith.constant 2 : index
    %c0_224 = arith.constant 0 : index
    %584 = vector.load %arg4[%c0_222, %c2_223, %c0_224] : memref<2x4x256xf32, #tpu.memory_space<vmem>>, vector<2x1x256xf32>
    %585 = vector.shape_cast %584 : vector<2x1x256xf32> to vector<2x256xf32>
    %586 = vector.shape_cast %583 : vector<2x256xf32> to vector<2x1x256xf32>
    tpu.vector_store %arg4[%c0_222, %c2_223, %c0_224], %586 {strides = array<i32>} : memref<2x4x256xf32, #tpu.memory_space<vmem>>, vector<2x1x256xf32>,
    %c0_225 = arith.constant 0 : index
    %c3_226 = arith.constant 3 : index
    %c0_227 = arith.constant 0 : index
    %587 = vector.load %arg3[%c0_225, %c3_226, %c0_227] : memref<2x4x256xf32, #tpu.memory_space<vmem>>, vector<2x1x256xf32>
    %588 = vector.shape_cast %587 : vector<2x1x256xf32> to vector<2x256xf32>
    %589 = arith.mulf %588, %568 : vector<2x256xf32>
    %c0_228 = arith.constant 0 : index
    %c3_229 = arith.constant 3 : index
    %c0_230 = arith.constant 0 : index
    %590 = vector.load %arg4[%c0_228, %c3_229, %c0_230] : memref<2x4x256xf32, #tpu.memory_space<vmem>>, vector<2x1x256xf32>
    %591 = vector.shape_cast %590 : vector<2x1x256xf32> to vector<2x256xf32>
    %592 = vector.shape_cast %589 : vector<2x256xf32> to vector<2x1x256xf32>
    tpu.vector_store %arg4[%c0_228, %c3_229, %c0_230], %592 {strides = array<i32>} : memref<2x4x256xf32, #tpu.memory_space<vmem>>, vector<2x1x256xf32>,
    return
  }
  func.func @transform_0(%arg0: i32) -> i32 {
    %c0_i32 = arith.constant 0 : i32
    %c0_i32_0 = arith.constant 0 : i32
    return %c0_i32 : i32
  }
  func.func @transform_1(%arg0: i32) -> (i32, i32) {
    %c0_i32 = arith.constant 0 : i32
    %c0_i32_0 = arith.constant 0 : i32
    %c0_i32_1 = arith.constant 0 : i32
    return %c0_i32, %c0_i32_0 : i32, i32
  }
  func.func @transform_2(%arg0: i32) -> (i32, i32, i32) {
    %c0_i32 = arith.constant 0 : i32
    %c0_i32_0 = arith.constant 0 : i32
    %c0_i32_1 = arith.constant 0 : i32
    return %arg0, %c0_i32, %c0_i32_0 : i32, i32, i32
  }
  func.func @transform_3(%arg0: i32) -> (i32, i32, i32) {
    %c0_i32 = arith.constant 0 : i32
    %c0_i32_0 = arith.constant 0 : i32
    %c0_i32_1 = arith.constant 0 : i32
    return %arg0, %c0_i32, %c0_i32_0 : i32, i32, i32
  }
}

</mosaic_0001>

<llo_original>
// kernel: tpu_custom_call.1
$region0: #{tpu_custom_call.1}
  #allocation0 [shape = 'u32[]', space=smem, size = 0x4, offset = 0x4, fixed_abs, tag = 'smem constant byte address 0x4 - core index']
  #allocation1 [shape = 'u32[144,128]{1,0:T(1,128)}', space=vmem, size = 0x12000, scoped, tag = 'internal scratch']
  #allocation2 [shape = 'f32[2,512]{1,0:T(2,128)}', space=vmem, size = 0x1000, scoped, tag = 'scratch operand']
  #allocation3 [shape = 'f32[2,512]{1,0:T(2,128)}', space=vmem, size = 0x1000, scoped, tag = 'scratch operand']
  %s0 = inlined_call_operand.hbm [shape: f32[98], index: 0, kind: input, shape index: {}]
  %s1 = inlined_call_operand.hbm [shape: f32[7,256], index: 1, kind: input, shape index: {}]
  %s2 = inlined_call_operand.hbm [shape: f32[2,4,256], index: 2, kind: input, shape index: {}]
  %s3 = inlined_call_operand.hbm [shape: f32[2,4,256], index: 3, kind: output, shape index: {}]
  %s4 = sld [smem:[#allocation0]]
  $region34: #{tpu_custom_call.1} parent=0
    _
  %s6 = ssub.s32 1, %s4
  %s7 = scalar_select 0, %s6, %s4
  $region1: #{tpu_custom_call.1} parent=0
    #allocation4 [shape = 'u8[512]{0}', space=smem, size = 0x200, scoped, tag = 'input window, operand 0, single buffered']
    #allocation5 [shape = 's32[1]{0}', space=sflag, size = 0x4, scoped, tag = 'scoped memory for tpu_custom_call.1']
    #allocation6 [shape = 's32[1]{0}', space=sflag, size = 0x4, scoped, tag = 'scoped memory for tpu_custom_call.1']
    #allocation7 [shape = 's32[1]{0}', space=sflag, size = 0x4, scoped, tag = 'scoped memory for tpu_custom_call.1']
    #allocation8 [shape = 'u8[8192]{0}', space=vmem, size = 0x2000, scoped, tag = 'input window, operand 1, single buffered']
    #allocation9 [shape = 'u8[8192]{0}', space=vmem, size = 0x2000, scoped, tag = 'input window, operand 2, single buffered']
    #allocation10 [shape = 's32[1]{0}', space=sflag, size = 0x4, scoped, tag = 'scoped memory for tpu_custom_call.1']
    #allocation11 [shape = 'u8[8192]{0}', space=vmem, size = 0x2000, scoped, tag = 'output window, operand 0, single buffered']
    %8 = vsyncpa [#allocation7], 0
    %9 = vsyncpa [#allocation5], 0
    %10 = vsyncpa [#allocation10], 0
    %11 = vsyncpa [#allocation6], 0
    // Predicated region
    $region2: #{tpu_custom_call.1} parent=1 // pred_check
      _
    $region3: #{tpu_custom_call.1} parent=1 // pred_check_branch
      %13 = sbr.rel (0) target = $region5
    $region4: #{tpu_custom_call.1} parent=1 // pred_region
      %s15 = ssub.s32 16, 16
      %16 = vsyncadd [#allocation7], %s15
      %19 = dma.hbm_to_smem %s0, 16, [#allocation4], [#allocation7]
    $region5: #{tpu_custom_call.1} parent=1 // pred_fallthru
      _
    // Predicated region
    $region6: #{tpu_custom_call.1} parent=1 // pred_check
      _
    $region7: #{tpu_custom_call.1} parent=1 // pred_check_branch
      %21 = sbr.rel (0) target = $region9
    $region8: #{tpu_custom_call.1} parent=1 // pred_region
      %s23 = ssub.s32 256, 256
      %24 = vsyncadd [#allocation5], %s23
      %s26 = sshll.u32 [#allocation8], 4
      %s27 = int_to_ptr.vmem [resolvable:$true] %s26
      %29 = dma.hbm_to_vmem [thread:$0]  %s1, 256, %s27, [#allocation5]
    $region9: #{tpu_custom_call.1} parent=1 // pred_fallthru
      _
    // Predicated region
    $region10: #{tpu_custom_call.1} parent=1 // pred_check
      _
    $region11: #{tpu_custom_call.1} parent=1 // pred_check_branch
      %31 = sbr.rel (0) target = $region13
    $region12: #{tpu_custom_call.1} parent=1 // pred_region
      %s33 = ssub.s32 256, 256
      %34 = vsyncadd [#allocation10], %s33
      %s35 = sshll.u32 [#allocation9], 4
      %s36 = int_to_ptr.vmem [resolvable:$true] %s35
      %41 = dma.hbm_to_vmem [thread:$0]  %s2, 256, %s36, [#allocation10], 128, 128, 8
    $region13: #{tpu_custom_call.1} parent=1 // pred_fallthru
      _
    // Predicated region
    $region14: #{tpu_custom_call.1} parent=1 // pred_check
      _
    $region15: #{tpu_custom_call.1} parent=1 // pred_check_branch
      %43 = sbr.rel (0) target = $region17
    $region16: #{tpu_custom_call.1} parent=1 // pred_region
      %44 = dma.done [#allocation7], 16
    $region17: #{tpu_custom_call.1} parent=1 // pred_fallthru
      _
    // Predicated region
    $region18: #{tpu_custom_call.1} parent=1 // pred_check
      _
    $region19: #{tpu_custom_call.1} parent=1 // pred_check_branch
      %46 = sbr.rel (0) target = $region21
    $region20: #{tpu_custom_call.1} parent=1 // pred_region
      %47 = dma.done [#allocation5], 256
    $region21: #{tpu_custom_call.1} parent=1 // pred_fallthru
      _
    // Predicated region
    $region22: #{tpu_custom_call.1} parent=1 // pred_check
      _
    $region23: #{tpu_custom_call.1} parent=1 // pred_check_branch
      %49 = sbr.rel (0) target = $region25
    $region24: #{tpu_custom_call.1} parent=1 // pred_region
      %50 = dma.done [#allocation10], 256
    $region25: #{tpu_custom_call.1} parent=1 // pred_fallthru
      _
    %51 = sfence
    %52 = vst [vmem:[#allocation2] sm:$0x3] 0.0
    %53 = vst [vmem:[#allocation2 + $0x6] sm:$0x3] 0.0
    %54 = vst [vmem:[#allocation3] sm:$0x3] 0.0
    %55 = vst [vmem:[#allocation3 + $0x6] sm:$0x3] 0.0
    %v56 = vld [vmem:[#allocation9] ss:$4 sm:$0x3]
    %s57 = scalar_lea.vmem [#allocation9], 8
    %v58 = vld [vmem:[%s57] ss:$4 sm:$0x3]
    %s59 = scalar_lea.vmem [#allocation9], 1
    %v60 = vld [vmem:[%s59] ss:$4 sm:$0x3]
    %s61 = scalar_lea.vmem [#allocation9], 9
    %v62 = vld [vmem:[%s61] ss:$4 sm:$0x3]
    %v63 = vadd.f32 %v56, %v60
    %v64 = vadd.f32 %v58, %v62
    %v65 = vmax.f32 %v56, %v60
    %v66 = vmax.f32 %v58, %v62
    %s67 = scalar_lea.vmem [#allocation9], 2
    %v68 = vld [vmem:[%s67] ss:$4 sm:$0x3]
    %s69 = scalar_lea.vmem [#allocation9], 10
    %v70 = vld [vmem:[%s69] ss:$4 sm:$0x3]
    %v71 = vadd.f32 %v63, %v68
    %v72 = vadd.f32 %v64, %v70
    %v73 = vmax.f32 %v65, %v68
    %v74 = vmax.f32 %v66, %v70
    %s75 = scalar_lea.vmem [#allocation9], 3
    %v76 = vld [vmem:[%s75] ss:$4 sm:$0x3]
    %s77 = scalar_lea.vmem [#allocation9], 11
    %v78 = vld [vmem:[%s77] ss:$4 sm:$0x3]
    %v79 = vadd.f32 %v71, %v76
    %v80 = vadd.f32 %v72, %v78
    %v81 = vmax.f32 %v73, %v76
    %v82 = vmax.f32 %v74, %v78
    %v83 = vmul.f32 %v79, 0.25
    %v84 = vmul.f32 %v80, 0.25
    %v87 = vcombine.low %v83, %v84
    %v89 = vunpack.c.l.s4 1935823168
    %v90 = vunpack.c.0.s8 %v89
    %v91 = vlaneseq
    %v92 = vshrl.u32 %v91, 7
    %v93 = vsub.s32 %v90, %v92
    %v94 = vrot.slane %v87, %v93
    %96 = vst [vmem:[#allocation2 + $0x2] sm:$0xf] %v94
    %v99 = vcombine.low %v81, %v82
    %v101 = vunpack.c.l.s4 1935823168
    %v102 = vunpack.c.0.s8 %v101
    %v103 = vlaneseq
    %v104 = vshrl.u32 %v103, 7
    %v105 = vsub.s32 %v102, %v104
    %v106 = vrot.slane %v99, %v105
    %108 = vst [vmem:[#allocation3 + $0x2] sm:$0xf] %v106
    %s109 = sld [smem:[#allocation4]]
    %v110 = vld [vmem:[#allocation2] sm:$0x3f]
    %v111 = vstv %s109
    %v112 = vmul.f32 %v111, %v110
    %v113 = vadd.f32 %v112, 0.0
    %s114 = sld [smem:[#allocation4 + $0x31]]
    %v115 = vld [vmem:[#allocation3] sm:$0x3f]
    %v116 = vstv %s114
    %v117 = vmul.f32 %v116, %v115
    %v118 = vadd.f32 %v113, %v117
    %s119 = sld [smem:[#allocation4 + $0x7]]
    %v120 = vstv %s119
    %v121 = vmul.f32 %v120, %v110
    %123 = vrot.lane.b32.xlu0 %v121, 112
    %v124 = vpop.permute.xlu0 %123
    %v125 = vrot.slane %v124, 2
    %vm126 = vcmask 916480
    %v127 = vsel %vm126, %v124, %v125
    %v129 = vadd.f32 %v118, %v127
    %s130 = sld [smem:[#allocation4 + $0x38]]
    %v131 = vstv %s130
    %v132 = vmul.f32 %v131, %v115
    %134 = vrot.lane.b32.xlu0 %v132, 112
    %v135 = vpop.permute.xlu0 %134
    %v136 = vrot.slane %v135, 2
    %v137 = vsel %vm126, %v135, %v136
    %v139 = vadd.f32 %v129, %v137
    %s140 = sld [smem:[#allocation4 + $0xe]]
    %v141 = vstv %s140
    %v142 = vmul.f32 %v141, %v110
    %144 = vrot.lane.b32.xlu0 %v142, 96
    %v145 = vpop.permute.xlu0 %144
    %v146 = vrot.slane %v145, 2
    %vm147 = vcmask 785408
    %v148 = vsel %vm147, %v145, %v146
    %v150 = vadd.f32 %v139, %v148
    %s151 = sld [smem:[#allocation4 + $0x3f]]
    %v152 = vstv %s151
    %v153 = vmul.f32 %v152, %v115
    %155 = vrot.lane.b32.xlu0 %v153, 96
    %v156 = vpop.permute.xlu0 %155
    %v157 = vrot.slane %v156, 2
    %v158 = vsel %vm147, %v156, %v157
    %v160 = vadd.f32 %v150, %v158
    %s161 = sld [smem:[#allocation4 + $0x15]]
    %v162 = vstv %s161
    %v163 = vmul.f32 %v162, %v110
    %165 = vrot.lane.b32.xlu0 %v163, 80
    %v166 = vpop.permute.xlu0 %165
    %v167 = vrot.slane %v166, 2
    %vm168 = vcmask 654336
    %v169 = vsel %vm168, %v166, %v167
    %v171 = vadd.f32 %v160, %v169
    %s172 = sld [smem:[#allocation4 + $0x46]]
    %v173 = vstv %s172
    %v174 = vmul.f32 %v173, %v115
    %176 = vrot.lane.b32.xlu0 %v174, 80
    %v177 = vpop.permute.xlu0 %176
    %v178 = vrot.slane %v177, 2
    %v179 = vsel %vm168, %v177, %v178
    %v181 = vadd.f32 %v171, %v179
    %s182 = sld [smem:[#allocation4 + $0x1c]]
    %v183 = vld [vmem:[#allocation2 + $0x2] sm:$0x3f]
    %v184 = vstv %s182
    %v185 = vmul.f32 %v184, %v183
    %187 = vrot.lane.b32.xlu0 %v185, 64
    %v188 = vpop.permute.xlu0 %187
    %v189 = vrot.slane %v188, 6
    %vm190 = vcmask 523264
    %v191 = vsel %vm190, %v189, %v188
    %v193 = vadd.f32 %v181, %v191
    %s194 = sld [smem:[#allocation4 + $0x4d]]
    %v195 = vld [vmem:[#allocation3 + $0x2] sm:$0x3f]
    %v196 = vstv %s194
    %v197 = vmul.f32 %v196, %v195
    %199 = vrot.lane.b32.xlu0 %v197, 64
    %v200 = vpop.permute.xlu0 %199
    %v201 = vrot.slane %v200, 6
    %v202 = vsel %vm190, %v201, %v200
    %v204 = vadd.f32 %v193, %v202
    %s205 = sld [smem:[#allocation4 + $0x23]]
    %v206 = vstv %s205
    %v207 = vmul.f32 %v206, %v183
    %209 = vrot.lane.b32.xlu0 %v207, 48
    %v210 = vpop.permute.xlu0 %209
    %v211 = vrot.slane %v210, 6
    %vm212 = vcmask 392192
    %v213 = vsel %vm212, %v211, %v210
    %v215 = vadd.f32 %v204, %v213
    %s216 = sld [smem:[#allocation4 + $0x54]]
    %v217 = vstv %s216
    %v218 = vmul.f32 %v217, %v195
    %220 = vrot.lane.b32.xlu0 %v218, 48
    %v221 = vpop.permute.xlu0 %220
    %v222 = vrot.slane %v221, 6
    %v223 = vsel %vm212, %v222, %v221
    %v225 = vadd.f32 %v215, %v223
    %s226 = sld [smem:[#allocation4 + $0x2a]]
    %v227 = vstv %s226
    %v228 = vmul.f32 %v227, %v183
    %230 = vrot.lane.b32.xlu0 %v228, 32
    %v231 = vpop.permute.xlu0 %230
    %v232 = vrot.slane %v231, 6
    %vm233 = vcmask 261120
    %v234 = vsel %vm233, %v232, %v231
    %v236 = vadd.f32 %v225, %v234
    %s237 = sld [smem:[#allocation4 + $0x5b]]
    %v238 = vstv %s237
    %v239 = vmul.f32 %v238, %v195
    %241 = vrot.lane.b32.xlu0 %v239, 32
    %v242 = vpop.permute.xlu0 %241
    %v243 = vrot.slane %v242, 6
    %v244 = vsel %vm233, %v243, %v242
    %v246 = vadd.f32 %v236, %v244
    %v247 = vld [vmem:[#allocation8] ss:$8 sm:$0x3]
    %v249 = vlaneseq
    %v250 = vshrl.u32 %v249, 7
    %v251 = vsub.s32 0, %v250
    %v252 = vrot.slane %v247, %v251
    %v253 = vlaneseq
    %v254 = vshrl.u32 %v253, 7
    %v255 = vsub.s32 1, %v254
    %v256 = vrot.slane %v247, %v255
    %v260 = vcombine.high %v246, %v246
    %v262 = vunpack.c.l.s4 1983009808
    %v263 = vunpack.c.0.s8 %v262
    %v264 = vlaneseq
    %v265 = vshrl.u32 %v264, 7
    %v266 = vsub.s32 %v263, %v265
    %v267 = vrot.slane %v246, %v266
    %v269 = vunpack.c.l.s4 1983009808
    %v270 = vunpack.c.0.s8 %v269
    %v271 = vlaneseq
    %v272 = vshrl.u32 %v271, 7
    %v273 = vsub.s32 %v270, %v272
    %v274 = vrot.slane %v260, %v273
    %v275 = vcombine.high %v267, %v267
    %276 = vrot.lane.b32.xlu0 %v267, 51
    %v277 = vpop.permute.xlu0 %276
    %278 = vrot.lane.b32.xlu0 %v275, 51
    %v279 = vpop.permute.xlu0 %278
    %280 = vrot.lane.b32.xlu0 %v274, 51
    %v281 = vpop.permute.xlu0 %280
    %vm282 = vcmask 416768
    %v283 = vsel %vm282, %v277, %v279
    %v284 = vsel %vm282, %v279, %v281
    %v287 = vmul.f32 %v252, %v283
    %v288 = vmul.f32 %v256, %v284
    %v289 = vadd.f32 %v287, 0.0
    %v290 = vadd.f32 %v288, 0.0
    %s291 = sld [smem:[#allocation4 + $0x1]]
    %v292 = vld [vmem:[#allocation2] sm:$0x3f]
    %v293 = vstv %s291
    %v294 = vmul.f32 %v293, %v292
    %v295 = vadd.f32 %v294, 0.0
    %s296 = sld [smem:[#allocation4 + $0x32]]
    %v297 = vld [vmem:[#allocation3] sm:$0x3f]
    %v298 = vstv %s296
    %v299 = vmul.f32 %v298, %v297
    %v300 = vadd.f32 %v295, %v299
    %s301 = sld [smem:[#allocation4 + $0x8]]
    %v302 = vstv %s301
    %v303 = vmul.f32 %v302, %v292
    %305 = vrot.lane.b32.xlu0 %v303, 112
    %v306 = vpop.permute.xlu0 %305
    %v307 = vrot.slane %v306, 2
    %v308 = vsel %vm126, %v306, %v307
    %v310 = vadd.f32 %v300, %v308
    %s311 = sld [smem:[#allocation4 + $0x39]]
    %v312 = vstv %s311
    %v313 = vmul.f32 %v312, %v297
    %315 = vrot.lane.b32.xlu0 %v313, 112
    %v316 = vpop.permute.xlu0 %315
    %v317 = vrot.slane %v316, 2
    %v318 = vsel %vm126, %v316, %v317
    %v320 = vadd.f32 %v310, %v318
    %s321 = sld [smem:[#allocation4 + $0xf]]
    %v322 = vstv %s321
    %v323 = vmul.f32 %v322, %v292
    %325 = vrot.lane.b32.xlu0 %v323, 96
    %v326 = vpop.permute.xlu0 %325
    %v327 = vrot.slane %v326, 2
    %v328 = vsel %vm147, %v326, %v327
    %v330 = vadd.f32 %v320, %v328
    %s331 = sld [smem:[#allocation4 + $0x40]]
    %v332 = vstv %s331
    %v333 = vmul.f32 %v332, %v297
    %335 = vrot.lane.b32.xlu0 %v333, 96
    %v336 = vpop.permute.xlu0 %335
    %v337 = vrot.slane %v336, 2
    %v338 = vsel %vm147, %v336, %v337
    %v340 = vadd.f32 %v330, %v338
    %s341 = sld [smem:[#allocation4 + $0x16]]
    %v342 = vstv %s341
    %v343 = vmul.f32 %v342, %v292
    %345 = vrot.lane.b32.xlu0 %v343, 80
    %v346 = vpop.permute.xlu0 %345
    %v347 = vrot.slane %v346, 2
    %v348 = vsel %vm168, %v346, %v347
    %v350 = vadd.f32 %v340, %v348
    %s351 = sld [smem:[#allocation4 + $0x47]]
    %v352 = vstv %s351
    %v353 = vmul.f32 %v352, %v297
    %355 = vrot.lane.b32.xlu0 %v353, 80
    %v356 = vpop.permute.xlu0 %355
    %v357 = vrot.slane %v356, 2
    %v358 = vsel %vm168, %v356, %v357
    %v360 = vadd.f32 %v350, %v358
    %s361 = sld [smem:[#allocation4 + $0x1d]]
    %v362 = vld [vmem:[#allocation2 + $0x2] sm:$0x3f]
    %v363 = vstv %s361
    %v364 = vmul.f32 %v363, %v362
    %366 = vrot.lane.b32.xlu0 %v364, 64
    %v367 = vpop.permute.xlu0 %366
    %v368 = vrot.slane %v367, 6
    %v369 = vsel %vm190, %v368, %v367
    %v371 = vadd.f32 %v360, %v369
    %s372 = sld [smem:[#allocation4 + $0x4e]]
    %v373 = vld [vmem:[#allocation3 + $0x2] sm:$0x3f]
    %v374 = vstv %s372
    %v375 = vmul.f32 %v374, %v373
    %377 = vrot.lane.b32.xlu0 %v375, 64
    %v378 = vpop.permute.xlu0 %377
    %v379 = vrot.slane %v378, 6
    %v380 = vsel %vm190, %v379, %v378
    %v382 = vadd.f32 %v371, %v380
    %s383 = sld [smem:[#allocation4 + $0x24]]
    %v384 = vstv %s383
    %v385 = vmul.f32 %v384, %v362
    %387 = vrot.lane.b32.xlu0 %v385, 48
    %v388 = vpop.permute.xlu0 %387
    %v389 = vrot.slane %v388, 6
    %v390 = vsel %vm212, %v389, %v388
    %v392 = vadd.f32 %v382, %v390
    %s393 = sld [smem:[#allocation4 + $0x55]]
    %v394 = vstv %s393
    %v395 = vmul.f32 %v394, %v373
    %397 = vrot.lane.b32.xlu0 %v395, 48
    %v398 = vpop.permute.xlu0 %397
    %v399 = vrot.slane %v398, 6
    %v400 = vsel %vm212, %v399, %v398
    %v402 = vadd.f32 %v392, %v400
    %s403 = sld [smem:[#allocation4 + $0x2b]]
    %v404 = vstv %s403
    %v405 = vmul.f32 %v404, %v362
    %407 = vrot.lane.b32.xlu0 %v405, 32
    %v408 = vpop.permute.xlu0 %407
    %v409 = vrot.slane %v408, 6
    %v410 = vsel %vm233, %v409, %v408
    %v412 = vadd.f32 %v402, %v410
    %s413 = sld [smem:[#allocation4 + $0x5c]]
    %v414 = vstv %s413
    %v415 = vmul.f32 %v414, %v373
    %417 = vrot.lane.b32.xlu0 %v415, 32
    %v418 = vpop.permute.xlu0 %417
    %v419 = vrot.slane %v418, 6
    %v420 = vsel %vm233, %v419, %v418
    %v422 = vadd.f32 %v412, %v420
    %s423 = scalar_lea.vmem [#allocation8], 1
    %v424 = vld [vmem:[%s423] ss:$8 sm:$0x3]
    %v426 = vlaneseq
    %v427 = vshrl.u32 %v426, 7
    %v428 = vsub.s32 0, %v427
    %v429 = vrot.slane %v424, %v428
    %v430 = vlaneseq
    %v431 = vshrl.u32 %v430, 7
    %v432 = vsub.s32 1, %v431
    %v433 = vrot.slane %v424, %v432
    %v437 = vcombine.high %v422, %v422
    %v439 = vunpack.c.l.s4 1983009808
    %v440 = vunpack.c.0.s8 %v439
    %v441 = vlaneseq
    %v442 = vshrl.u32 %v441, 7
    %v443 = vsub.s32 %v440, %v442
    %v444 = vrot.slane %v422, %v443
    %v446 = vunpack.c.l.s4 1983009808
    %v447 = vunpack.c.0.s8 %v446
    %v448 = vlaneseq
    %v449 = vshrl.u32 %v448, 7
    %v450 = vsub.s32 %v447, %v449
    %v451 = vrot.slane %v437, %v450
    %v452 = vcombine.high %v444, %v444
    %453 = vrot.lane.b32.xlu0 %v444, 50
    %v454 = vpop.permute.xlu0 %453
    %455 = vrot.lane.b32.xlu0 %v452, 50
    %v456 = vpop.permute.xlu0 %455
    %457 = vrot.lane.b32.xlu0 %v451, 50
    %v458 = vpop.permute.xlu0 %457
    %vm459 = vcmask 408576
    %v460 = vsel %vm459, %v454, %v456
    %v461 = vsel %vm459, %v456, %v458
    %v464 = vmul.f32 %v429, %v460
    %v465 = vmul.f32 %v433, %v461
    %v466 = vadd.f32 %v289, %v464
    %v467 = vadd.f32 %v290, %v465
    %s468 = sld [smem:[#allocation4 + $0x2]]
    %v469 = vld [vmem:[#allocation2] sm:$0x3f]
    %v470 = vstv %s468
    %v471 = vmul.f32 %v470, %v469
    %v472 = vadd.f32 %v471, 0.0
    %s473 = sld [smem:[#allocation4 + $0x33]]
    %v474 = vld [vmem:[#allocation3] sm:$0x3f]
    %v475 = vstv %s473
    %v476 = vmul.f32 %v475, %v474
    %v477 = vadd.f32 %v472, %v476
    %s478 = sld [smem:[#allocation4 + $0x9]]
    %v479 = vstv %s478
    %v480 = vmul.f32 %v479, %v469
    %482 = vrot.lane.b32.xlu0 %v480, 112
    %v483 = vpop.permute.xlu0 %482
    %v484 = vrot.slane %v483, 2
    %v485 = vsel %vm126, %v483, %v484
    %v487 = vadd.f32 %v477, %v485
    %s488 = sld [smem:[#allocation4 + $0x3a]]
    %v489 = vstv %s488
    %v490 = vmul.f32 %v489, %v474
    %492 = vrot.lane.b32.xlu0 %v490, 112
    %v493 = vpop.permute.xlu0 %492
    %v494 = vrot.slane %v493, 2
    %v495 = vsel %vm126, %v493, %v494
    %v497 = vadd.f32 %v487, %v495
    %s498 = sld [smem:[#allocation4 + $0x10]]
    %v499 = vstv %s498
    %v500 = vmul.f32 %v499, %v469
    %502 = vrot.lane.b32.xlu0 %v500, 96
    %v503 = vpop.permute.xlu0 %502
    %v504 = vrot.slane %v503, 2
    %v505 = vsel %vm147, %v503, %v504
    %v507 = vadd.f32 %v497, %v505
    %s508 = sld [smem:[#allocation4 + $0x41]]
    %v509 = vstv %s508
    %v510 = vmul.f32 %v509, %v474
    %512 = vrot.lane.b32.xlu0 %v510, 96
    %v513 = vpop.permute.xlu0 %512
    %v514 = vrot.slane %v513, 2
    %v515 = vsel %vm147, %v513, %v514
    %v517 = vadd.f32 %v507, %v515
    %s518 = sld [smem:[#allocation4 + $0x17]]
    %v519 = vstv %s518
    %v520 = vmul.f32 %v519, %v469
    %522 = vrot.lane.b32.xlu0 %v520, 80
    %v523 = vpop.permute.xlu0 %522
    %v524 = vrot.slane %v523, 2
    %v525 = vsel %vm168, %v523, %v524
    %v527 = vadd.f32 %v517, %v525
    %s528 = sld [smem:[#allocation4 + $0x48]]
    %v529 = vstv %s528
    %v530 = vmul.f32 %v529, %v474
    %532 = vrot.lane.b32.xlu0 %v530, 80
    %v533 = vpop.permute.xlu0 %532
    %v534 = vrot.slane %v533, 2
    %v535 = vsel %vm168, %v533, %v534
    %v537 = vadd.f32 %v527, %v535
    %s538 = sld [smem:[#allocation4 + $0x1e]]
    %v539 = vld [vmem:[#allocation2 + $0x2] sm:$0x3f]
    %v540 = vstv %s538
    %v541 = vmul.f32 %v540, %v539
    %543 = vrot.lane.b32.xlu0 %v541, 64
    %v544 = vpop.permute.xlu0 %543
    %v545 = vrot.slane %v544, 6
    %v546 = vsel %vm190, %v545, %v544
    %v548 = vadd.f32 %v537, %v546
    %s549 = sld [smem:[#allocation4 + $0x4f]]
    %v550 = vld [vmem:[#allocation3 + $0x2] sm:$0x3f]
    %v551 = vstv %s549
    %v552 = vmul.f32 %v551, %v550
    %554 = vrot.lane.b32.xlu0 %v552, 64
    %v555 = vpop.permute.xlu0 %554
    %v556 = vrot.slane %v555, 6
    %v557 = vsel %vm190, %v556, %v555
    %v559 = vadd.f32 %v548, %v557
    %s560 = sld [smem:[#allocation4 + $0x25]]
    %v561 = vstv %s560
    %v562 = vmul.f32 %v561, %v539
    %564 = vrot.lane.b32.xlu0 %v562, 48
    %v565 = vpop.permute.xlu0 %564
    %v566 = vrot.slane %v565, 6
    %v567 = vsel %vm212, %v566, %v565
    %v569 = vadd.f32 %v559, %v567
    %s570 = sld [smem:[#allocation4 + $0x56]]
    %v571 = vstv %s570
    %v572 = vmul.f32 %v571, %v550
    %574 = vrot.lane.b32.xlu0 %v572, 48
    %v575 = vpop.permute.xlu0 %574
    %v576 = vrot.slane %v575, 6
    %v577 = vsel %vm212, %v576, %v575
    %v579 = vadd.f32 %v569, %v577
    %s580 = sld [smem:[#allocation4 + $0x2c]]
    %v581 = vstv %s580
    %v582 = vmul.f32 %v581, %v539
    %584 = vrot.lane.b32.xlu0 %v582, 32
    %v585 = vpop.permute.xlu0 %584
    %v586 = vrot.slane %v585, 6
    %v587 = vsel %vm233, %v586, %v585
    %v589 = vadd.f32 %v579, %v587
    %s590 = sld [smem:[#allocation4 + $0x5d]]
    %v591 = vstv %s590
    %v592 = vmul.f32 %v591, %v550
    %594 = vrot.lane.b32.xlu0 %v592, 32
    %v595 = vpop.permute.xlu0 %594
    %v596 = vrot.slane %v595, 6
    %v597 = vsel %vm233, %v596, %v595
    %v599 = vadd.f32 %v589, %v597
    %s600 = scalar_lea.vmem [#allocation8], 2
    %v601 = vld [vmem:[%s600] ss:$8 sm:$0x3]
    %v603 = vlaneseq
    %v604 = vshrl.u32 %v603, 7
    %v605 = vsub.s32 0, %v604
    %v606 = vrot.slane %v601, %v605
    %v607 = vlaneseq
    %v608 = vshrl.u32 %v607, 7
    %v609 = vsub.s32 1, %v608
    %v610 = vrot.slane %v601, %v609
    %v614 = vcombine.high %v599, %v599
    %v616 = vunpack.c.l.s4 1983009808
    %v617 = vunpack.c.0.s8 %v616
    %v618 = vlaneseq
    %v619 = vshrl.u32 %v618, 7
    %v620 = vsub.s32 %v617, %v619
    %v621 = vrot.slane %v599, %v620
    %v623 = vunpack.c.l.s4 1983009808
    %v624 = vunpack.c.0.s8 %v623
    %v625 = vlaneseq
    %v626 = vshrl.u32 %v625, 7
    %v627 = vsub.s32 %v624, %v626
    %v628 = vrot.slane %v614, %v627
    %v629 = vcombine.high %v621, %v621
    %630 = vrot.lane.b32.xlu0 %v621, 49
    %v631 = vpop.permute.xlu0 %630
    %632 = vrot.lane.b32.xlu0 %v629, 49
    %v633 = vpop.permute.xlu0 %632
    %634 = vrot.lane.b32.xlu0 %v628, 49
    %v635 = vpop.permute.xlu0 %634
    %vm636 = vcmask 400384
    %v637 = vsel %vm636, %v631, %v633
    %v638 = vsel %vm636, %v633, %v635
    %v641 = vmul.f32 %v606, %v637
    %v642 = vmul.f32 %v610, %v638
    %v643 = vadd.f32 %v466, %v641
    %v644 = vadd.f32 %v467, %v642
    %s645 = sld [smem:[#allocation4 + $0x3]]
    %v646 = vld [vmem:[#allocation2] sm:$0x3f]
    %v647 = vstv %s645
    %v648 = vmul.f32 %v647, %v646
    %v649 = vadd.f32 %v648, 0.0
    %s650 = sld [smem:[#allocation4 + $0x34]]
    %v651 = vld [vmem:[#allocation3] sm:$0x3f]
    %v652 = vstv %s650
    %v653 = vmul.f32 %v652, %v651
    %v654 = vadd.f32 %v649, %v653
    %s655 = sld [smem:[#allocation4 + $0xa]]
    %v656 = vstv %s655
    %v657 = vmul.f32 %v656, %v646
    %659 = vrot.lane.b32.xlu0 %v657, 112
    %v660 = vpop.permute.xlu0 %659
    %v661 = vrot.slane %v660, 2
    %v662 = vsel %vm126, %v660, %v661
    %v664 = vadd.f32 %v654, %v662
    %s665 = sld [smem:[#allocation4 + $0x3b]]
    %v666 = vstv %s665
    %v667 = vmul.f32 %v666, %v651
    %669 = vrot.lane.b32.xlu0 %v667, 112
    %v670 = vpop.permute.xlu0 %669
    %v671 = vrot.slane %v670, 2
    %v672 = vsel %vm126, %v670, %v671
    %v674 = vadd.f32 %v664, %v672
    %s675 = sld [smem:[#allocation4 + $0x11]]
    %v676 = vstv %s675
    %v677 = vmul.f32 %v676, %v646
    %679 = vrot.lane.b32.xlu0 %v677, 96
    %v680 = vpop.permute.xlu0 %679
    %v681 = vrot.slane %v680, 2
    %v682 = vsel %vm147, %v680, %v681
    %v684 = vadd.f32 %v674, %v682
    %s685 = sld [smem:[#allocation4 + $0x42]]
    %v686 = vstv %s685
    %v687 = vmul.f32 %v686, %v651
    %689 = vrot.lane.b32.xlu0 %v687, 96
    %v690 = vpop.permute.xlu0 %689
    %v691 = vrot.slane %v690, 2
    %v692 = vsel %vm147, %v690, %v691
    %v694 = vadd.f32 %v684, %v692
    %s695 = sld [smem:[#allocation4 + $0x18]]
    %v696 = vld [vmem:[#allocation2 + $0x2] sm:$0xf]
    %v697 = vstv %s695
    %v698 = vmul.f32 %v697, %v696
    %700 = vrot.lane.b32.xlu0 %v698, 80
    %v701 = vpop.permute.xlu0 %700
    %v702 = vrot.slane %v701, 6
    %v703 = vsel %vm168, %v702, %v701
    %v705 = vadd.f32 %v694, %v703
    %s706 = sld [smem:[#allocation4 + $0x49]]
    %v707 = vld [vmem:[#allocation3 + $0x2] sm:$0xf]
    %v708 = vstv %s706
    %v709 = vmul.f32 %v708, %v707
    %711 = vrot.lane.b32.xlu0 %v709, 80
    %v712 = vpop.permute.xlu0 %711
    %v713 = vrot.slane %v712, 6
    %v714 = vsel %vm168, %v713, %v712
    %v716 = vadd.f32 %v705, %v714
    %s717 = sld [smem:[#allocation4 + $0x1f]]
    %v718 = vld [vmem:[#allocation2 + $0x2] sm:$0x3f]
    %v719 = vstv %s717
    %v720 = vmul.f32 %v719, %v718
    %722 = vrot.lane.b32.xlu0 %v720, 64
    %v723 = vpop.permute.xlu0 %722
    %v724 = vrot.slane %v723, 6
    %v725 = vsel %vm190, %v724, %v723
    %v727 = vadd.f32 %v716, %v725
    %s728 = sld [smem:[#allocation4 + $0x50]]
    %v729 = vld [vmem:[#allocation3 + $0x2] sm:$0x3f]
    %v730 = vstv %s728
    %v731 = vmul.f32 %v730, %v729
    %733 = vrot.lane.b32.xlu0 %v731, 64
    %v734 = vpop.permute.xlu0 %733
    %v735 = vrot.slane %v734, 6
    %v736 = vsel %vm190, %v735, %v734
    %v738 = vadd.f32 %v727, %v736
    %s739 = sld [smem:[#allocation4 + $0x26]]
    %v740 = vstv %s739
    %v741 = vmul.f32 %v740, %v718
    %743 = vrot.lane.b32.xlu0 %v741, 48
    %v744 = vpop.permute.xlu0 %743
    %v745 = vrot.slane %v744, 6
    %v746 = vsel %vm212, %v745, %v744
    %v748 = vadd.f32 %v738, %v746
    %s749 = sld [smem:[#allocation4 + $0x57]]
    %v750 = vstv %s749
    %v751 = vmul.f32 %v750, %v729
    %753 = vrot.lane.b32.xlu0 %v751, 48
    %v754 = vpop.permute.xlu0 %753
    %v755 = vrot.slane %v754, 6
    %v756 = vsel %vm212, %v755, %v754
    %v758 = vadd.f32 %v748, %v756
    %s759 = sld [smem:[#allocation4 + $0x2d]]
    %v760 = vstv %s759
    %v761 = vmul.f32 %v760, %v718
    %763 = vrot.lane.b32.xlu0 %v761, 32
    %v764 = vpop.permute.xlu0 %763
    %v765 = vrot.slane %v764, 6
    %v766 = vsel %vm233, %v765, %v764
    %v768 = vadd.f32 %v758, %v766
    %s769 = sld [smem:[#allocation4 + $0x5e]]
    %v770 = vstv %s769
    %v771 = vmul.f32 %v770, %v729
    %773 = vrot.lane.b32.xlu0 %v771, 32
    %v774 = vpop.permute.xlu0 %773
    %v775 = vrot.slane %v774, 6
    %v776 = vsel %vm233, %v775, %v774
    %v778 = vadd.f32 %v768, %v776
    %s779 = scalar_lea.vmem [#allocation8], 3
    %v780 = vld [vmem:[%s779] ss:$8 sm:$0x3]
    %v782 = vlaneseq
    %v783 = vshrl.u32 %v782, 7
    %v784 = vsub.s32 0, %v783
    %v785 = vrot.slane %v780, %v784
    %v786 = vlaneseq
    %v787 = vshrl.u32 %v786, 7
    %v788 = vsub.s32 1, %v787
    %v789 = vrot.slane %v780, %v788
    %v793 = vcombine.high %v778, %v778
    %v795 = vunpack.c.l.s4 1983009808
    %v796 = vunpack.c.0.s8 %v795
    %v797 = vlaneseq
    %v798 = vshrl.u32 %v797, 7
    %v799 = vsub.s32 %v796, %v798
    %v800 = vrot.slane %v778, %v799
    %v802 = vunpack.c.l.s4 1983009808
    %v803 = vunpack.c.0.s8 %v802
    %v804 = vlaneseq
    %v805 = vshrl.u32 %v804, 7
    %v806 = vsub.s32 %v803, %v805
    %v807 = vrot.slane %v793, %v806
    %v808 = vcombine.high %v800, %v800
    %809 = vrot.lane.b32.xlu0 %v800, 48
    %v810 = vpop.permute.xlu0 %809
    %811 = vrot.lane.b32.xlu0 %v808, 48
    %v812 = vpop.permute.xlu0 %811
    %813 = vrot.lane.b32.xlu0 %v807, 48
    %v814 = vpop.permute.xlu0 %813
    %v815 = vsel %vm212, %v810, %v812
    %v816 = vsel %vm212, %v812, %v814
    %v819 = vmul.f32 %v785, %v815
    %v820 = vmul.f32 %v789, %v816
    %v821 = vadd.f32 %v643, %v819
    %v822 = vadd.f32 %v644, %v820
    %s823 = sld [smem:[#allocation4 + $0x4]]
    %v824 = vld [vmem:[#allocation2] sm:$0x3f]
    %v825 = vstv %s823
    %v826 = vmul.f32 %v825, %v824
    %v827 = vadd.f32 %v826, 0.0
    %s828 = sld [smem:[#allocation4 + $0x35]]
    %v829 = vld [vmem:[#allocation3] sm:$0x3f]
    %v830 = vstv %s828
    %v831 = vmul.f32 %v830, %v829
    %v832 = vadd.f32 %v827, %v831
    %s833 = sld [smem:[#allocation4 + $0xb]]
    %v834 = vstv %s833
    %v835 = vmul.f32 %v834, %v824
    %837 = vrot.lane.b32.xlu0 %v835, 112
    %v838 = vpop.permute.xlu0 %837
    %v839 = vrot.slane %v838, 2
    %v840 = vsel %vm126, %v838, %v839
    %v842 = vadd.f32 %v832, %v840
    %s843 = sld [smem:[#allocation4 + $0x3c]]
    %v844 = vstv %s843
    %v845 = vmul.f32 %v844, %v829
    %847 = vrot.lane.b32.xlu0 %v845, 112
    %v848 = vpop.permute.xlu0 %847
    %v849 = vrot.slane %v848, 2
    %v850 = vsel %vm126, %v848, %v849
    %v852 = vadd.f32 %v842, %v850
    %s853 = sld [smem:[#allocation4 + $0x12]]
    %v854 = vstv %s853
    %v855 = vmul.f32 %v854, %v824
    %857 = vrot.lane.b32.xlu0 %v855, 96
    %v858 = vpop.permute.xlu0 %857
    %v859 = vrot.slane %v858, 2
    %v860 = vsel %vm147, %v858, %v859
    %v862 = vadd.f32 %v852, %v860
    %s863 = sld [smem:[#allocation4 + $0x43]]
    %v864 = vstv %s863
    %v865 = vmul.f32 %v864, %v829
    %867 = vrot.lane.b32.xlu0 %v865, 96
    %v868 = vpop.permute.xlu0 %867
    %v869 = vrot.slane %v868, 2
    %v870 = vsel %vm147, %v868, %v869
    %v872 = vadd.f32 %v862, %v870
    %s873 = sld [smem:[#allocation4 + $0x19]]
    %v874 = vld [vmem:[#allocation2 + $0x2] sm:$0x3f]
    %v875 = vstv %s873
    %v876 = vmul.f32 %v875, %v874
    %878 = vrot.lane.b32.xlu0 %v876, 80
    %v879 = vpop.permute.xlu0 %878
    %v880 = vrot.slane %v879, 6
    %v881 = vsel %vm168, %v880, %v879
    %v883 = vadd.f32 %v872, %v881
    %s884 = sld [smem:[#allocation4 + $0x4a]]
    %v885 = vld [vmem:[#allocation3 + $0x2] sm:$0x3f]
    %v886 = vstv %s884
    %v887 = vmul.f32 %v886, %v885
    %889 = vrot.lane.b32.xlu0 %v887, 80
    %v890 = vpop.permute.xlu0 %889
    %v891 = vrot.slane %v890, 6
    %v892 = vsel %vm168, %v891, %v890
    %v894 = vadd.f32 %v883, %v892
    %s895 = sld [smem:[#allocation4 + $0x20]]
    %v896 = vstv %s895
    %v897 = vmul.f32 %v896, %v874
    %899 = vrot.lane.b32.xlu0 %v897, 64
    %v900 = vpop.permute.xlu0 %899
    %v901 = vrot.slane %v900, 6
    %v902 = vsel %vm190, %v901, %v900
    %v904 = vadd.f32 %v894, %v902
    %s905 = sld [smem:[#allocation4 + $0x51]]
    %v906 = vstv %s905
    %v907 = vmul.f32 %v906, %v885
    %909 = vrot.lane.b32.xlu0 %v907, 64
    %v910 = vpop.permute.xlu0 %909
    %v911 = vrot.slane %v910, 6
    %v912 = vsel %vm190, %v911, %v910
    %v914 = vadd.f32 %v904, %v912
    %s915 = sld [smem:[#allocation4 + $0x27]]
    %v916 = vstv %s915
    %v917 = vmul.f32 %v916, %v874
    %919 = vrot.lane.b32.xlu0 %v917, 48
    %v920 = vpop.permute.xlu0 %919
    %v921 = vrot.slane %v920, 6
    %v922 = vsel %vm212, %v921, %v920
    %v924 = vadd.f32 %v914, %v922
    %s925 = sld [smem:[#allocation4 + $0x58]]
    %v926 = vstv %s925
    %v927 = vmul.f32 %v926, %v885
    %929 = vrot.lane.b32.xlu0 %v927, 48
    %v930 = vpop.permute.xlu0 %929
    %v931 = vrot.slane %v930, 6
    %v932 = vsel %vm212, %v931, %v930
    %v934 = vadd.f32 %v924, %v932
    %s935 = sld [smem:[#allocation4 + $0x2e]]
    %v936 = vstv %s935
    %v937 = vmul.f32 %v936, %v874
    %939 = vrot.lane.b32.xlu0 %v937, 32
    %v940 = vpop.permute.xlu0 %939
    %v941 = vrot.slane %v940, 6
    %v942 = vsel %vm233, %v941, %v940
    %v944 = vadd.f32 %v934, %v942
    %s945 = sld [smem:[#allocation4 + $0x5f]]
    %v946 = vstv %s945
    %v947 = vmul.f32 %v946, %v885
    %949 = vrot.lane.b32.xlu0 %v947, 32
    %v950 = vpop.permute.xlu0 %949
    %v951 = vrot.slane %v950, 6
    %v952 = vsel %vm233, %v951, %v950
    %v954 = vadd.f32 %v944, %v952
    %s955 = scalar_lea.vmem [#allocation8], 4
    %v956 = vld [vmem:[%s955] ss:$8 sm:$0x3]
    %v958 = vlaneseq
    %v959 = vshrl.u32 %v958, 7
    %v960 = vsub.s32 0, %v959
    %v961 = vrot.slane %v956, %v960
    %v962 = vlaneseq
    %v963 = vshrl.u32 %v962, 7
    %v964 = vsub.s32 1, %v963
    %v965 = vrot.slane %v956, %v964
    %v969 = vcombine.high %v954, %v954
    %v971 = vunpack.c.l.s4 1983009808
    %v972 = vunpack.c.0.s8 %v971
    %v973 = vlaneseq
    %v974 = vshrl.u32 %v973, 7
    %v975 = vsub.s32 %v972, %v974
    %v976 = vrot.slane %v954, %v975
    %v978 = vunpack.c.l.s4 1983009808
    %v979 = vunpack.c.0.s8 %v978
    %v980 = vlaneseq
    %v981 = vshrl.u32 %v980, 7
    %v982 = vsub.s32 %v979, %v981
    %v983 = vrot.slane %v969, %v982
    %v984 = vcombine.high %v976, %v976
    %985 = vrot.lane.b32.xlu0 %v976, 47
    %v986 = vpop.permute.xlu0 %985
    %987 = vrot.lane.b32.xlu0 %v984, 47
    %v988 = vpop.permute.xlu0 %987
    %989 = vrot.lane.b32.xlu0 %v983, 47
    %v990 = vpop.permute.xlu0 %989
    %vm991 = vcmask 384000
    %v992 = vsel %vm991, %v986, %v988
    %v993 = vsel %vm991, %v988, %v990
    %v996 = vmul.f32 %v961, %v992
    %v997 = vmul.f32 %v965, %v993
    %v998 = vadd.f32 %v821, %v996
    %v999 = vadd.f32 %v822, %v997
    %s1000 = sld [smem:[#allocation4 + $0x5]]
    %v1001 = vld [vmem:[#allocation2] sm:$0x3f]
    %v1002 = vstv %s1000
    %v1003 = vmul.f32 %v1002, %v1001
    %v1004 = vadd.f32 %v1003, 0.0
    %s1005 = sld [smem:[#allocation4 + $0x36]]
    %v1006 = vld [vmem:[#allocation3] sm:$0x3f]
    %v1007 = vstv %s1005
    %v1008 = vmul.f32 %v1007, %v1006
    %v1009 = vadd.f32 %v1004, %v1008
    %s1010 = sld [smem:[#allocation4 + $0xc]]
    %v1011 = vstv %s1010
    %v1012 = vmul.f32 %v1011, %v1001
    %1014 = vrot.lane.b32.xlu0 %v1012, 112
    %v1015 = vpop.permute.xlu0 %1014
    %v1016 = vrot.slane %v1015, 2
    %v1017 = vsel %vm126, %v1015, %v1016
    %v1019 = vadd.f32 %v1009, %v1017
    %s1020 = sld [smem:[#allocation4 + $0x3d]]
    %v1021 = vstv %s1020
    %v1022 = vmul.f32 %v1021, %v1006
    %1024 = vrot.lane.b32.xlu0 %v1022, 112
    %v1025 = vpop.permute.xlu0 %1024
    %v1026 = vrot.slane %v1025, 2
    %v1027 = vsel %vm126, %v1025, %v1026
    %v1029 = vadd.f32 %v1019, %v1027
    %s1030 = sld [smem:[#allocation4 + $0x13]]
    %v1031 = vstv %s1030
    %v1032 = vmul.f32 %v1031, %v1001
    %1034 = vrot.lane.b32.xlu0 %v1032, 96
    %v1035 = vpop.permute.xlu0 %1034
    %v1036 = vrot.slane %v1035, 2
    %v1037 = vsel %vm147, %v1035, %v1036
    %v1039 = vadd.f32 %v1029, %v1037
    %s1040 = sld [smem:[#allocation4 + $0x44]]
    %v1041 = vstv %s1040
    %v1042 = vmul.f32 %v1041, %v1006
    %1044 = vrot.lane.b32.xlu0 %v1042, 96
    %v1045 = vpop.permute.xlu0 %1044
    %v1046 = vrot.slane %v1045, 2
    %v1047 = vsel %vm147, %v1045, %v1046
    %v1049 = vadd.f32 %v1039, %v1047
    %s1050 = sld [smem:[#allocation4 + $0x1a]]
    %v1051 = vld [vmem:[#allocation2 + $0x2] sm:$0x3f]
    %v1052 = vstv %s1050
    %v1053 = vmul.f32 %v1052, %v1051
    %1055 = vrot.lane.b32.xlu0 %v1053, 80
    %v1056 = vpop.permute.xlu0 %1055
    %v1057 = vrot.slane %v1056, 6
    %v1058 = vsel %vm168, %v1057, %v1056
    %v1060 = vadd.f32 %v1049, %v1058
    %s1061 = sld [smem:[#allocation4 + $0x4b]]
    %v1062 = vld [vmem:[#allocation3 + $0x2] sm:$0x3f]
    %v1063 = vstv %s1061
    %v1064 = vmul.f32 %v1063, %v1062
    %1066 = vrot.lane.b32.xlu0 %v1064, 80
    %v1067 = vpop.permute.xlu0 %1066
    %v1068 = vrot.slane %v1067, 6
    %v1069 = vsel %vm168, %v1068, %v1067
    %v1071 = vadd.f32 %v1060, %v1069
    %s1072 = sld [smem:[#allocation4 + $0x21]]
    %v1073 = vstv %s1072
    %v1074 = vmul.f32 %v1073, %v1051
    %1076 = vrot.lane.b32.xlu0 %v1074, 64
    %v1077 = vpop.permute.xlu0 %1076
    %v1078 = vrot.slane %v1077, 6
    %v1079 = vsel %vm190, %v1078, %v1077
    %v1081 = vadd.f32 %v1071, %v1079
    %s1082 = sld [smem:[#allocation4 + $0x52]]
    %v1083 = vstv %s1082
    %v1084 = vmul.f32 %v1083, %v1062
    %1086 = vrot.lane.b32.xlu0 %v1084, 64
    %v1087 = vpop.permute.xlu0 %1086
    %v1088 = vrot.slane %v1087, 6
    %v1089 = vsel %vm190, %v1088, %v1087
    %v1091 = vadd.f32 %v1081, %v1089
    %s1092 = sld [smem:[#allocation4 + $0x28]]
    %v1093 = vstv %s1092
    %v1094 = vmul.f32 %v1093, %v1051
    %1096 = vrot.lane.b32.xlu0 %v1094, 48
    %v1097 = vpop.permute.xlu0 %1096
    %v1098 = vrot.slane %v1097, 6
    %v1099 = vsel %vm212, %v1098, %v1097
    %v1101 = vadd.f32 %v1091, %v1099
    %s1102 = sld [smem:[#allocation4 + $0x59]]
    %v1103 = vstv %s1102
    %v1104 = vmul.f32 %v1103, %v1062
    %1106 = vrot.lane.b32.xlu0 %v1104, 48
    %v1107 = vpop.permute.xlu0 %1106
    %v1108 = vrot.slane %v1107, 6
    %v1109 = vsel %vm212, %v1108, %v1107
    %v1111 = vadd.f32 %v1101, %v1109
    %s1112 = sld [smem:[#allocation4 + $0x2f]]
    %v1113 = vstv %s1112
    %v1114 = vmul.f32 %v1113, %v1051
    %1116 = vrot.lane.b32.xlu0 %v1114, 32
    %v1117 = vpop.permute.xlu0 %1116
    %v1118 = vrot.slane %v1117, 6
    %v1119 = vsel %vm233, %v1118, %v1117
    %v1121 = vadd.f32 %v1111, %v1119
    %s1122 = sld [smem:[#allocation4 + $0x60]]
    %v1123 = vstv %s1122
    %v1124 = vmul.f32 %v1123, %v1062
    %1126 = vrot.lane.b32.xlu0 %v1124, 32
    %v1127 = vpop.permute.xlu0 %1126
    %v1128 = vrot.slane %v1127, 6
    %v1129 = vsel %vm233, %v1128, %v1127
    %v1131 = vadd.f32 %v1121, %v1129
    %s1132 = scalar_lea.vmem [#allocation8], 5
    %v1133 = vld [vmem:[%s1132] ss:$8 sm:$0x3]
    %v1135 = vlaneseq
    %v1136 = vshrl.u32 %v1135, 7
    %v1137 = vsub.s32 0, %v1136
    %v1138 = vrot.slane %v1133, %v1137
    %v1139 = vlaneseq
    %v1140 = vshrl.u32 %v1139, 7
    %v1141 = vsub.s32 1, %v1140
    %v1142 = vrot.slane %v1133, %v1141
    %v1146 = vcombine.high %v1131, %v1131
    %v1148 = vunpack.c.l.s4 1983009808
    %v1149 = vunpack.c.0.s8 %v1148
    %v1150 = vlaneseq
    %v1151 = vshrl.u32 %v1150, 7
    %v1152 = vsub.s32 %v1149, %v1151
    %v1153 = vrot.slane %v1131, %v1152
    %v1155 = vunpack.c.l.s4 1983009808
    %v1156 = vunpack.c.0.s8 %v1155
    %v1157 = vlaneseq
    %v1158 = vshrl.u32 %v1157, 7
    %v1159 = vsub.s32 %v1156, %v1158
    %v1160 = vrot.slane %v1146, %v1159
    %v1161 = vcombine.high %v1153, %v1153
    %1162 = vrot.lane.b32.xlu0 %v1153, 46
    %v1163 = vpop.permute.xlu0 %1162
    %1164 = vrot.lane.b32.xlu0 %v1161, 46
    %v1165 = vpop.permute.xlu0 %1164
    %1166 = vrot.lane.b32.xlu0 %v1160, 46
    %v1167 = vpop.permute.xlu0 %1166
    %vm1168 = vcmask 375808
    %v1169 = vsel %vm1168, %v1163, %v1165
    %v1170 = vsel %vm1168, %v1165, %v1167
    %v1173 = vmul.f32 %v1138, %v1169
    %v1174 = vmul.f32 %v1142, %v1170
    %v1175 = vadd.f32 %v998, %v1173
    %v1176 = vadd.f32 %v999, %v1174
    %s1177 = sld [smem:[#allocation4 + $0x6]]
    %v1178 = vld [vmem:[#allocation2] sm:$0x3f]
    %v1179 = vstv %s1177
    %v1180 = vmul.f32 %v1179, %v1178
    %v1181 = vadd.f32 %v1180, 0.0
    %s1182 = sld [smem:[#allocation4 + $0x37]]
    %v1183 = vld [vmem:[#allocation3] sm:$0x3f]
    %v1184 = vstv %s1182
    %v1185 = vmul.f32 %v1184, %v1183
    %v1186 = vadd.f32 %v1181, %v1185
    %s1187 = sld [smem:[#allocation4 + $0xd]]
    %v1188 = vstv %s1187
    %v1189 = vmul.f32 %v1188, %v1178
    %1191 = vrot.lane.b32.xlu0 %v1189, 112
    %v1192 = vpop.permute.xlu0 %1191
    %v1193 = vrot.slane %v1192, 2
    %v1194 = vsel %vm126, %v1192, %v1193
    %v1196 = vadd.f32 %v1186, %v1194
    %s1197 = sld [smem:[#allocation4 + $0x3e]]
    %v1198 = vstv %s1197
    %v1199 = vmul.f32 %v1198, %v1183
    %1201 = vrot.lane.b32.xlu0 %v1199, 112
    %v1202 = vpop.permute.xlu0 %1201
    %v1203 = vrot.slane %v1202, 2
    %v1204 = vsel %vm126, %v1202, %v1203
    %v1206 = vadd.f32 %v1196, %v1204
    %s1207 = sld [smem:[#allocation4 + $0x14]]
    %v1208 = vstv %s1207
    %v1209 = vmul.f32 %v1208, %v1178
    %1211 = vrot.lane.b32.xlu0 %v1209, 96
    %v1212 = vpop.permute.xlu0 %1211
    %v1213 = vrot.slane %v1212, 2
    %v1214 = vsel %vm147, %v1212, %v1213
    %v1216 = vadd.f32 %v1206, %v1214
    %s1217 = sld [smem:[#allocation4 + $0x45]]
    %v1218 = vstv %s1217
    %v1219 = vmul.f32 %v1218, %v1183
    %1221 = vrot.lane.b32.xlu0 %v1219, 96
    %v1222 = vpop.permute.xlu0 %1221
    %v1223 = vrot.slane %v1222, 2
    %v1224 = vsel %vm147, %v1222, %v1223
    %v1226 = vadd.f32 %v1216, %v1224
    %s1227 = sld [smem:[#allocation4 + $0x1b]]
    %v1228 = vld [vmem:[#allocation2 + $0x2] sm:$0x3f]
    %v1229 = vstv %s1227
    %v1230 = vmul.f32 %v1229, %v1228
    %1232 = vrot.lane.b32.xlu0 %v1230, 80
    %v1233 = vpop.permute.xlu0 %1232
    %v1234 = vrot.slane %v1233, 6
    %v1235 = vsel %vm168, %v1234, %v1233
    %v1237 = vadd.f32 %v1226, %v1235
    %s1238 = sld [smem:[#allocation4 + $0x4c]]
    %v1239 = vld [vmem:[#allocation3 + $0x2] sm:$0x3f]
    %v1240 = vstv %s1238
    %v1241 = vmul.f32 %v1240, %v1239
    %1243 = vrot.lane.b32.xlu0 %v1241, 80
    %v1244 = vpop.permute.xlu0 %1243
    %v1245 = vrot.slane %v1244, 6
    %v1246 = vsel %vm168, %v1245, %v1244
    %v1248 = vadd.f32 %v1237, %v1246
    %s1249 = sld [smem:[#allocation4 + $0x22]]
    %v1250 = vstv %s1249
    %v1251 = vmul.f32 %v1250, %v1228
    %1253 = vrot.lane.b32.xlu0 %v1251, 64
    %v1254 = vpop.permute.xlu0 %1253
    %v1255 = vrot.slane %v1254, 6
    %v1256 = vsel %vm190, %v1255, %v1254
    %v1258 = vadd.f32 %v1248, %v1256
    %s1259 = sld [smem:[#allocation4 + $0x53]]
    %v1260 = vstv %s1259
    %v1261 = vmul.f32 %v1260, %v1239
    %1263 = vrot.lane.b32.xlu0 %v1261, 64
    %v1264 = vpop.permute.xlu0 %1263
    %v1265 = vrot.slane %v1264, 6
    %v1266 = vsel %vm190, %v1265, %v1264
    %v1268 = vadd.f32 %v1258, %v1266
    %s1269 = sld [smem:[#allocation4 + $0x29]]
    %v1270 = vstv %s1269
    %v1271 = vmul.f32 %v1270, %v1228
    %1273 = vrot.lane.b32.xlu0 %v1271, 48
    %v1274 = vpop.permute.xlu0 %1273
    %v1275 = vrot.slane %v1274, 6
    %v1276 = vsel %vm212, %v1275, %v1274
    %v1278 = vadd.f32 %v1268, %v1276
    %s1279 = sld [smem:[#allocation4 + $0x5a]]
    %v1280 = vstv %s1279
    %v1281 = vmul.f32 %v1280, %v1239
    %1283 = vrot.lane.b32.xlu0 %v1281, 48
    %v1284 = vpop.permute.xlu0 %1283
    %v1285 = vrot.slane %v1284, 6
    %v1286 = vsel %vm212, %v1285, %v1284
    %v1288 = vadd.f32 %v1278, %v1286
    %s1289 = sld [smem:[#allocation4 + $0x30]]
    %v1290 = vstv %s1289
    %v1291 = vmul.f32 %v1290, %v1228
    %1293 = vrot.lane.b32.xlu0 %v1291, 32
    %v1294 = vpop.permute.xlu0 %1293
    %v1295 = vrot.slane %v1294, 6
    %v1296 = vsel %vm233, %v1295, %v1294
    %v1298 = vadd.f32 %v1288, %v1296
    %s1299 = sld [smem:[#allocation4 + $0x61]]
    %v1300 = vstv %s1299
    %v1301 = vmul.f32 %v1300, %v1239
    %1303 = vrot.lane.b32.xlu0 %v1301, 32
    %v1304 = vpop.permute.xlu0 %1303
    %v1305 = vrot.slane %v1304, 6
    %v1306 = vsel %vm233, %v1305, %v1304
    %v1308 = vadd.f32 %v1298, %v1306
    %s1309 = scalar_lea.vmem [#allocation8], 6
    %v1310 = vld [vmem:[%s1309] ss:$8 sm:$0x3]
    %v1312 = vlaneseq
    %v1313 = vshrl.u32 %v1312, 7
    %v1314 = vsub.s32 0, %v1313
    %v1315 = vrot.slane %v1310, %v1314
    %v1316 = vlaneseq
    %v1317 = vshrl.u32 %v1316, 7
    %v1318 = vsub.s32 1, %v1317
    %v1319 = vrot.slane %v1310, %v1318
    %v1323 = vcombine.high %v1308, %v1308
    %v1325 = vunpack.c.l.s4 1983009808
    %v1326 = vunpack.c.0.s8 %v1325
    %v1327 = vlaneseq
    %v1328 = vshrl.u32 %v1327, 7
    %v1329 = vsub.s32 %v1326, %v1328
    %v1330 = vrot.slane %v1308, %v1329
    %v1332 = vunpack.c.l.s4 1983009808
    %v1333 = vunpack.c.0.s8 %v1332
    %v1334 = vlaneseq
    %v1335 = vshrl.u32 %v1334, 7
    %v1336 = vsub.s32 %v1333, %v1335
    %v1337 = vrot.slane %v1323, %v1336
    %v1338 = vcombine.high %v1330, %v1330
    %1339 = vrot.lane.b32.xlu0 %v1330, 45
    %v1340 = vpop.permute.xlu0 %1339
    %1341 = vrot.lane.b32.xlu0 %v1338, 45
    %v1342 = vpop.permute.xlu0 %1341
    %1343 = vrot.lane.b32.xlu0 %v1337, 45
    %v1344 = vpop.permute.xlu0 %1343
    %vm1345 = vcmask 367616
    %v1346 = vsel %vm1345, %v1340, %v1342
    %v1347 = vsel %vm1345, %v1342, %v1344
    %v1350 = vmul.f32 %v1315, %v1346
    %v1351 = vmul.f32 %v1319, %v1347
    %v1352 = vadd.f32 %v1175, %v1350
    %v1353 = vadd.f32 %v1176, %v1351
    %v1354 = vxor.u32 %v1352, 2147483648
    %v1355 = vxor.u32 %v1353, 2147483648
    %v1356 = vmul.f32 %v1354, 1.442695
    %v1357 = vpow.pop %v1356
    %v1358 = vmul.f32 %v1355, 1.442695
    %v1359 = vpow.pop %v1358
    %v1360 = vadd.f32 %v1357, 1.0
    %v1361 = vadd.f32 %v1359, 1.0
    %v1362 = vrcp.pop %v1360
    %v1363 = vmul.f32 1.0, %v1362
    %v1364 = vrcp.pop %v1361
    %v1365 = vmul.f32 1.0, %v1364
    %v1366 = vld [vmem:[#allocation9] ss:$4 sm:$0x3]
    %v1367 = vld [vmem:[%s57] ss:$4 sm:$0x3]
    %v1370 = vcombine.low %v1363, %v1365
    %v1372 = vunpack.c.l.s4 1966171168
    %v1373 = vunpack.c.0.s8 %v1372
    %v1374 = vlaneseq
    %v1375 = vshrl.u32 %v1374, 7
    %v1376 = vsub.s32 %v1373, %v1375
    %v1377 = vrot.slane %v1370, %v1376
    %v1378 = vcombine.high %v1377, %v1377
    %v1380 = vunpack.c.l.s4 1966171168
    %v1381 = vunpack.c.0.s8 %v1380
    %v1382 = vlaneseq
    %v1383 = vshrl.u32 %v1382, 7
    %v1384 = vsub.s32 %v1381, %v1383
    %v1385 = vrot.slane %v1377, %v1384
    %v1387 = vunpack.c.l.s4 1966171168
    %v1388 = vunpack.c.0.s8 %v1387
    %v1389 = vlaneseq
    %v1390 = vshrl.u32 %v1389, 7
    %v1391 = vsub.s32 %v1388, %v1390
    %v1392 = vrot.slane %v1378, %v1391
    %v1395 = vmul.f32 %v1366, %v1385
    %v1396 = vmul.f32 %v1367, %v1392
    %v1397 = vlaneseq
    %vm1398 = vcmp.ge.s32.totalorder %v1397, 0
    %vm1399 = vcmp.lt.s32.totalorder %v1397, 256
    %vm1400 = vmand %vm1398, %vm1399
    %1401 = vst.msk [vmem:[#allocation11] ss:$4 sm:$0x3] %vm1400, %v1395
    %s1402 = scalar_lea.vmem [#allocation11], 8
    %1403 = vst.msk [vmem:[%s1402] ss:$4 sm:$0x3] %vm1400, %v1396
    %v1404 = vld [vmem:[%s59] ss:$4 sm:$0x3]
    %v1405 = vld [vmem:[%s61] ss:$4 sm:$0x3]
    %v1406 = vmul.f32 %v1404, %v1385
    %v1407 = vmul.f32 %v1405, %v1392
    %s1408 = scalar_lea.vmem [#allocation11], 1
    %1409 = vst.msk [vmem:[%s1408] ss:$4 sm:$0x3] %vm1400, %v1406
    %s1410 = scalar_lea.vmem [#allocation11], 9
    %1411 = vst.msk [vmem:[%s1410] ss:$4 sm:$0x3] %vm1400, %v1407
    %v1412 = vld [vmem:[%s67] ss:$4 sm:$0x3]
    %v1413 = vld [vmem:[%s69] ss:$4 sm:$0x3]
    %v1414 = vmul.f32 %v1412, %v1385
    %v1415 = vmul.f32 %v1413, %v1392
    %s1416 = scalar_lea.vmem [#allocation11], 2
    %1417 = vst.msk [vmem:[%s1416] ss:$4 sm:$0x3] %vm1400, %v1414
    %s1418 = scalar_lea.vmem [#allocation11], 10
    %1419 = vst.msk [vmem:[%s1418] ss:$4 sm:$0x3] %vm1400, %v1415
    %v1420 = vld [vmem:[%s75] ss:$4 sm:$0x3]
    %v1421 = vld [vmem:[%s77] ss:$4 sm:$0x3]
    %v1422 = vmul.f32 %v1420, %v1385
    %v1423 = vmul.f32 %v1421, %v1392
    %s1424 = scalar_lea.vmem [#allocation11], 3
    %1425 = vst.msk [vmem:[%s1424] ss:$4 sm:$0x3] %vm1400, %v1422
    %s1426 = scalar_lea.vmem [#allocation11], 11
    %1427 = vst.msk [vmem:[%s1426] ss:$4 sm:$0x3] %vm1400, %v1423
    // Predicated region
    $region26: #{tpu_custom_call.1} parent=1 // pred_check
      _
    $region27: #{tpu_custom_call.1} parent=1 // pred_check_branch
      %1429 = sbr.rel (0) target = $region29
    $region28: #{tpu_custom_call.1} parent=1 // pred_region
      %s1431 = ssub.s32 256, 256
      %1432 = vsyncadd [#allocation6], %s1431
      %s1433 = sshll.u32 [#allocation11], 4
      %s1434 = int_to_ptr.vmem [resolvable:$true] %s1433
      %1439 = dma.vmem_to_hbm [thread:$0]  %s1434, 256, %s3, [#allocation6], 128, 128, 8
    $region29: #{tpu_custom_call.1} parent=1 // pred_fallthru
      _
    // Predicated region
    $region30: #{tpu_custom_call.1} parent=1 // pred_check
      _
    $region31: #{tpu_custom_call.1} parent=1 // pred_check_branch
      %1441 = sbr.rel (0) target = $region33
    $region32: #{tpu_custom_call.1} parent=1 // pred_region
      %1442 = dma.done [#allocation6], 256
    $region33: #{tpu_custom_call.1} parent=1 // pred_fallthru
      _
    %1443 = vsyncpa [#allocation5], 1
    %1444 = vsyncpa [#allocation10], 1
    %1445 = vsyncpa [#allocation6], 1
    %1446 = vsyncpa [#allocation7], 1

</llo_original>
